<compile_context>
chip_gen: v5e
topology: v5e:2x2
jax: 0.10.0
libtpu: 0.0.40
codegen_flags: <defaults>
</compile_context>

<pallas_src>
import functools

import jax
import jax.numpy as jnp
import numpy as np
from jax import lax
from jax.experimental import pallas as pl
from jax.experimental.pallas import tpu as pltpu


def _round_up(x, m):
    return (x + m - 1) // m * m


def _vmem_capacity_bytes():
    try:
        return int(pltpu.get_tpu_info().vmem_capacity_bytes)
    except Exception:
        return 64 << 20  # conservative fallback: v7x per-TensorCore VMEM


def _choose_time_chunk(seq_len, n_blk, emb, h_pad, budget_bytes):
    """Largest multiple-of-8 time chunk whose chunk-scaled VMEM fits budget."""
    tc = min(_round_up(max(seq_len, 1), 8), 256)

    def chunk_bytes(t):
        x_blk = n_blk * t * emb * 2          # bf16 x chunk, double-buffered
        gi = t * n_blk * 3 * h_pad * 4       # f32 projection scratch
        return 2 * x_blk + gi

    while tc > 8 and chunk_bytes(tc) > budget_bytes:
        tc = _round_up(tc // 2, 8)
    return tc


def _gru_kernel(lens_ref, x_ref, wih_ref, whh_ref, ghb_ref, bin_ref,
                o_ref, gi_ref, h_ref, *, t_chunk, n_blk, h_pad, unroll):
    """One (batch_block, time_chunk) grid step of the GRU.

    lens_ref: [n_blk, 1]          int32  per-row sequence lengths
    x_ref   : [t_chunk*n_blk, E]  bf16   time-major input chunk (row = t*Nb+n)
    wih_ref : [E, 3*h_pad]        bf16   W_ih^T, gate-blocked & lane-padded
    whh_ref : [h_pad, 3*h_pad]    bf16   W_hh^T, gate-blocked & lane-padded
    ghb_ref : [1, 3*h_pad]        f32    [b_ir+b_hr, b_iz+b_hz, b_hn]
    bin_ref : [1, h_pad]          f32    b_in (stays outside the r*(...) term)
    o_ref   : [n_blk, h_pad]      f32    final hidden state
    gi_ref  : VMEM [t_chunk*n_blk, 3*h_pad] f32   hoisted input projection
    h_ref   : VMEM [n_blk, h_pad] f32    recurrent state, persists over chunks
    """
    t_idx = pl.program_id(1)
    n_chunks = pl.num_programs(1)

    # New batch block -> reset the recurrent state accumulator.
    @pl.when(t_idx == 0)
    def _():
        h_ref[...] = jnp.zeros_like(h_ref)

    # ---- Phase 1: hoisted input projection for the whole chunk ------------
    # One large bf16 MXU matmul with f32 accumulation; no bias add here
    # (b_ir/b_iz folded into ghb, b_in added per step).
    gi_ref[...] = jnp.dot(x_ref[...], wih_ref[...],
                          preferred_element_type=jnp.float32)

    # Loop invariants hoisted off the serial path.
    lens = lens_ref[...]                      # [n_blk, 1] int32
    ghb = ghb_ref[...]                        # [1, 3*h_pad] f32
    b_in = bin_ref[...]                       # [1, h_pad]  f32
    whh = whh_ref[...]                        # [h_pad, 3*h_pad] bf16
    t_base = t_idx * t_chunk

    # ---- Phase 2: recurrence — only h @ W_hh^T stays on the serial path ---
    def step(t, h_prev):
        off = pl.multiple_of(t * n_blk, n_blk)            # sublane-aligned
        gi_t = gi_ref[pl.ds(off, n_blk), :]               # [n_blk, 3*h_pad]
        gh = jnp.dot(h_prev.astype(jnp.bfloat16), whh,
                     preferred_element_type=jnp.float32) + ghb

        # Gate slices cut exactly on 128-lane block boundaries.
        i_r = gi_t[:, 0 * h_pad:1 * h_pad]
        i_z = gi_t[:, 1 * h_pad:2 * h_pad]
        i_n = gi_t[:, 2 * h_pad:3 * h_pad]
        h_r = gh[:, 0 * h_pad:1 * h_pad]
        h_z = gh[:, 1 * h_pad:2 * h_pad]
        h_n = gh[:, 2 * h_pad:3 * h_pad]

        # sigmoid(x) == 0.5*(tanh(0.5*x) + 1): one EUP push instead of two.
        r = 0.5 * (jnp.tanh(0.5 * (i_r + h_r)) + 1.0)
        z = 0.5 * (jnp.tanh(0.5 * (i_z + h_z)) + 1.0)
        n = jnp.tanh(i_n + b_in + r * h_n)
        h_new = (1.0 - z) * n + z * h_prev

        # pack_padded_sequence semantics: freeze h once t >= length[row].
        valid = (t_base + t) < lens                       # [n_blk, 1] bool
        return jnp.where(valid, h_new, h_prev)

    h_final = lax.fori_loop(0, t_chunk, step, h_ref[...], unroll=unroll)
    h_ref[...] = h_final

    @pl.when(t_idx == n_chunks - 1)
    def _():
        o_ref[...] = h_final.astype(o_ref.dtype)


def headline_encoder_pallas(x_headline, headline_lengths, params):
    """
    Args:
      x_headline: [N, L, E] float32 (batch-first, as in the PyTorch module)
      headline_lengths: [N] int
      params: torch-convention GRU params (gate order r, z, n):
        w_ih [3H, E], w_hh [3H, H], b_ih [3H], b_hh [3H]
    Returns:
      h_headline: [N, H] float32
    """
    N, L, E = x_headline.shape
    H = params["w_hh"].shape[1]
    Hp = _round_up(H, 128)       # each gate gets its own full 128-lane block
    Np = _round_up(N, 8)         # sublane-pad the batch
    if Np > 128:                 # batch blocks of 128 rows ("parallel" axis)
        Nb = 128
        Np = _round_up(Np, Nb)
    else:
        Nb = Np
    n_bblk = Np // Nb

    cap = _vmem_capacity_bytes()
    Tc = _choose_time_chunk(L, Nb, E, Hp, int(cap * 0.45))
    Lp = _round_up(L, Tc)

    # Time-major, padded, bf16 input laid out per batch block as
    # [n_bblk, Lp*Nb, E] with row = t*Nb + n  (so a time chunk is contiguous).
    # TODO(synk): move this layout change into the BlockSpec + an in-kernel
    # tile transpose to save one x-sized HBM pass per call.
    x_p = jnp.pad(x_headline.astype(jnp.bfloat16),
                  ((0, Np - N), (0, Lp - L), (0, 0)))           # [Np, Lp, E]
    x_p = x_p.reshape(n_bblk, Nb, Lp, E).transpose(0, 2, 1, 3)  # [B, Lp, Nb, E]
    x_p = x_p.reshape(n_bblk, Lp * Nb, E)

    lens = jnp.pad(headline_lengths.astype(jnp.int32), (0, Np - N))
    lens = lens.reshape(Np, 1)

    # Gate-blocked, lane-padded weights: gate g lives in cols [g*Hp, g*Hp+H);
    # padded rows/cols are zero so padded h lanes stay exactly zero.
    def pack_w(w_torch, rows_pad):          # [3H, in_dim] -> [rows_pad, 3*Hp]
        wt = jnp.asarray(w_torch, jnp.float32).T            # [in_dim, 3H]
        out = jnp.zeros((rows_pad, 3 * Hp), jnp.float32)
        for g in range(3):
            out = out.at[:wt.shape[0], g * Hp:g * Hp + H].set(
                wt[:, g * H:(g + 1) * H])
        return out

    wih_p = pack_w(params["w_ih"], E).astype(jnp.bfloat16)     # [E,  3*Hp]
    whh_p = pack_w(params["w_hh"], Hp).astype(jnp.bfloat16)    # [Hp, 3*Hp]

    b_ih = jnp.asarray(params["b_ih"], jnp.float32)
    b_hh = jnp.asarray(params["b_hh"], jnp.float32)
    # Recurrent-side bias: b_ir/b_iz fold exactly; b_in must stay separate
    # (it sits outside r*(...) in the PyTorch GRU, b_hn sits inside).
    ghb = jnp.zeros((1, 3 * Hp), jnp.float32)
    ghb = ghb.at[0, 0 * Hp:0 * Hp + H].set(b_ih[0 * H:1 * H] + b_hh[0 * H:1 * H])
    ghb = ghb.at[0, 1 * Hp:1 * Hp + H].set(b_ih[1 * H:2 * H] + b_hh[1 * H:2 * H])
    ghb = ghb.at[0, 2 * Hp:2 * Hp + H].set(b_hh[2 * H:3 * H])
    b_in_blk = jnp.zeros((1, Hp), jnp.float32).at[0, :H].set(b_ih[2 * H:3 * H])

    grid = (n_bblk, Lp // Tc)
    kernel = functools.partial(_gru_kernel, t_chunk=Tc, n_blk=Nb, h_pad=Hp,
                               unroll=min(8, Tc))

    # Explicit VMEM budget: double-buffered blocks + scratch + headroom.
    x_blk = Tc * Nb * E * 2                                   # bf16 chunk
    w_bytes = (E + Hp) * 3 * Hp * 2 + 4 * Hp * 4              # weights+biases
    blocks = 2 * (x_blk + Nb * 4 + Nb * Hp * 4 + w_bytes)
    scratch = Tc * Nb * 3 * Hp * 4 + Nb * Hp * 4
    vmem_limit = min(max(int((blocks + scratch) * 1.3) + (2 << 20), 32 << 20),
                     cap)

    out_padded = pl.pallas_call(
        kernel,
        out_shape=jax.ShapeDtypeStruct((Np, Hp), jnp.float32),
        grid_spec=pltpu.PrefetchScalarGridSpec(
            num_scalar_prefetch=0,
            grid=grid,
            in_specs=[
                pl.BlockSpec((Nb, 1), lambda b, t: (b, 0)),          # lengths
                pl.BlockSpec((None, Tc * Nb, E), lambda b, t: (b, t, 0)),  # x
                pl.BlockSpec((E, 3 * Hp), lambda b, t: (0, 0)),      # W_ih^T
                pl.BlockSpec((Hp, 3 * Hp), lambda b, t: (0, 0)),     # W_hh^T
                pl.BlockSpec((1, 3 * Hp), lambda b, t: (0, 0)),      # gh bias
                pl.BlockSpec((1, Hp), lambda b, t: (0, 0)),          # b_in
            ],
            out_specs=pl.BlockSpec((Nb, Hp), lambda b, t: (b, 0)),
            scratch_shapes=[
                pltpu.VMEM((Tc * Nb, 3 * Hp), jnp.float32),  # input projection
                pltpu.VMEM((Nb, Hp), jnp.float32),           # recurrent state
            ]),
        compiler_params=pltpu.CompilerParams(
            dimension_semantics=("parallel", "arbitrary"),
            vmem_limit_bytes=vmem_limit),
    )(lens, x_p, wih_p, whh_p, ghb, b_in_blk)

    return out_padded[:N, :H]


def headline_encoder_ref(x_headline, headline_lengths, params,
                         matmul_dtype=jnp.float32):
    """Pure-JAX reference GRU + pack_padded_sequence length masking.

    matmul_dtype=bfloat16 reproduces the kernel's MXU operand precision
    (f32 accumulation) for a tight numerical comparison.
    """
    N, L, E = x_headline.shape
    H = params["w_hh"].shape[1]
    w_iht = jnp.asarray(params["w_ih"], jnp.float32).T   # [E, 3H]
    w_hht = jnp.asarray(params["w_hh"], jnp.float32).T   # [H, 3H]
    b_ih = jnp.asarray(params["b_ih"], jnp.float32)
    b_hh = jnp.asarray(params["b_hh"], jnp.float32)

    def mm(a, b):
        return jnp.dot(a.astype(matmul_dtype), b.astype(matmul_dtype),
                       preferred_element_type=jnp.float32)

    def step(h, inputs):
        x_t, t = inputs
        gi = mm(x_t, w_iht) + b_ih
        gh = mm(h, w_hht) + b_hh
        i_r, i_z, i_n = jnp.split(gi, 3, axis=-1)
        h_r, h_z, h_n = jnp.split(gh, 3, axis=-1)
        r = jax.nn.sigmoid(i_r + h_r)
        z = jax.nn.sigmoid(i_z + h_z)
        n = jnp.tanh(i_n + r * h_n)
        h_new = (1.0 - z) * n + z * h
        mask = (t < headline_lengths)[:, None]
        return jnp.where(mask, h_new, h), None

    h0 = jnp.zeros((N, H), jnp.float32)
    xs = jnp.transpose(x_headline.astype(jnp.float32), (1, 0, 2))
    h_final, _ = lax.scan(step, h0, (xs, jnp.arange(L, dtype=jnp.int32)))
    return h_final


if __name__ == "__main__":
    # Small shapes consistent with the module: N=4 headlines, L=8 tokens,
    # embedding_dim=32, hidden_dim=32.
    N, L, E, H = 4, 8, 32, 32

    key = jax.random.PRNGKey(0)
    k_x, k_wih, k_whh, k_bih, k_bhh = jax.random.split(key, 5)

    x_headline = jax.random.normal(k_x, (N, L, E), dtype=jnp.float32)
    headline_lengths = jnp.array([8, 5, 3, 1], dtype=jnp.int32)

    scale = 1.0 / np.sqrt(H)  # PyTorch nn.GRU default init range
    params = {
        "w_ih": jax.random.uniform(k_wih, (3 * H, E), jnp.float32, -scale, scale),
        "w_hh": jax.random.uniform(k_whh, (3 * H, H), jnp.float32, -scale, scale),
        "b_ih": jax.random.uniform(k_bih, (3 * H,), jnp.float32, -scale, scale),
        "b_hh": jax.random.uniform(k_bhh, (3 * H,), jnp.float32, -scale, scale),
    }

    out = headline_encoder_pallas(x_headline, headline_lengths, params)
    out = jax.block_until_ready(out)
    assert out.shape == (N, H)

    # Tight check against a reference that matches the kernel's bf16 MXU
    # operands (f32 accumulation, f32 gate math).
    ref_bf16 = headline_encoder_ref(x_headline, headline_lengths, params,
                                    matmul_dtype=jnp.bfloat16)
    np.testing.assert_allclose(np.asarray(out), np.asarray(ref_bf16),
                               rtol=2e-3, atol=2e-3)

    # Loose sanity check against the full-f32 reference (difference is only
    # the bf16 matmul-operand rounding).
    ref_f32 = headline_encoder_ref(x_headline, headline_lengths, params)
    np.testing.assert_allclose(np.asarray(out), np.asarray(ref_f32),
                               rtol=1e-1, atol=1e-1)

    print("KERNEL_OK")
</pallas_src>

<mosaic_0001>
module attributes {stable_mosaic.version = 11 : i64} {
  func.func @_gru_kernel(%arg0: i32, %arg1: i32, %arg2: memref<8x1xi32, #tpu.memory_space<vmem>>, %arg3: memref<1x64x32xbf16, #tpu.memory_space<vmem>>, %arg4: memref<32x384xbf16, #tpu.memory_space<vmem>>, %arg5: memref<128x384xbf16, #tpu.memory_space<vmem>>, %arg6: memref<1x384xf32, #tpu.memory_space<vmem>>, %arg7: memref<1x128xf32, #tpu.memory_space<vmem>>, %arg8: memref<8x128xf32, #tpu.memory_space<vmem>>, %arg9: memref<64x384xf32, #tpu.memory_space<vmem>>, %arg10: memref<8x128xf32, #tpu.memory_space<vmem>>) attributes {dimension_semantics = [#tpu.dimension_semantics<parallel>, #tpu.dimension_semantics<arbitrary>], iteration_bounds = array<i64: 1, 1>, scalar_prefetch = 0 : i64, scratch_operands = 2 : i64, tpu.core_type = #tpu.core_type<tc>, window_params = [{transform_indices = @transform_0, window_bounds = array<i64: 8, 1>}, {transform_indices = @transform_1, window_bounds = array<i64: 1, 64, 32>}, {pipeline_mode = #tpu.pipeline_mode<synchronous>, transform_indices = @transform_2, window_bounds = array<i64: 32, 384>}, {pipeline_mode = #tpu.pipeline_mode<synchronous>, transform_indices = @transform_3, window_bounds = array<i64: 128, 384>}, {pipeline_mode = #tpu.pipeline_mode<synchronous>, transform_indices = @transform_4, window_bounds = array<i64: 1, 384>}, {pipeline_mode = #tpu.pipeline_mode<synchronous>, transform_indices = @transform_5, window_bounds = array<i64: 1, 128>}, {transform_indices = @transform_6, window_bounds = array<i64: 8, 128>}]} {
    %c0_i32 = arith.constant 0 : i32
    %0 = arith.cmpi eq, %arg1, %c0_i32 : i32
    %1 = arith.extui %0 : i1 to i32
    %c0_i32_0 = arith.constant 0 : i32
    %2 = arith.cmpi ne, %1, %c0_i32_0 : i32
    scf.if %2 {
      %cst_103 = arith.constant 0.000000e+00 : f32
      %386 = vector.broadcast %cst_103 : f32 to vector<8x128xf32>
      %c0_104 = arith.constant 0 : index
      %c0_105 = arith.constant 0 : index
      %387 = vector.load %arg10[%c0_104, %c0_105] : memref<8x128xf32, #tpu.memory_space<vmem>>, vector<8x128xf32>
      tpu.vector_store %arg10[%c0_104, %c0_105], %386 {strides = array<i32>} : memref<8x128xf32, #tpu.memory_space<vmem>>, vector<8x128xf32>,
    } else {
    }
    %c0 = arith.constant 0 : index
    %c0_1 = arith.constant 0 : index
    %c0_2 = arith.constant 0 : index
    %3 = vector.load %arg3[%c0, %c0_1, %c0_2] : memref<1x64x32xbf16, #tpu.memory_space<vmem>>, vector<1x64x32xbf16>
    %4 = vector.shape_cast %3 : vector<1x64x32xbf16> to vector<64x32xbf16>
    %c0_3 = arith.constant 0 : index
    %c0_4 = arith.constant 0 : index
    %5 = vector.load %arg4[%c0_3, %c0_4] : memref<32x384xbf16, #tpu.memory_space<vmem>>, vector<32x384xbf16>
    %cst = arith.constant dense<0.000000e+00> : vector<64x384xf32>
    %6 = tpu.matmul %4, %5, %cst {dimension_numbers = #tpu.dot_dimension_numbers<[1], [0], [0], [1], [0, 0, 1, 1], [], []>} : vector<64x32xbf16>, vector<32x384xbf16>, vector<64x384xf32> -> vector<64x384xf32>
    %c0_5 = arith.constant 0 : index
    %c0_6 = arith.constant 0 : index
    %7 = vector.load %arg9[%c0_5, %c0_6] : memref<64x384xf32, #tpu.memory_space<vmem>>, vector<64x384xf32>
    tpu.vector_store %arg9[%c0_5, %c0_6], %6 {strides = array<i32>} : memref<64x384xf32, #tpu.memory_space<vmem>>, vector<64x384xf32>,
    %c0_7 = arith.constant 0 : index
    %c0_8 = arith.constant 0 : index
    %8 = vector.load %arg2[%c0_7, %c0_8] : memref<8x1xi32, #tpu.memory_space<vmem>>, vector<8x1xi32>
    %c0_9 = arith.constant 0 : index
    %c0_10 = arith.constant 0 : index
    %9 = vector.load %arg6[%c0_9, %c0_10] : memref<1x384xf32, #tpu.memory_space<vmem>>, vector<1x384xf32>
    %c0_11 = arith.constant 0 : index
    %c0_12 = arith.constant 0 : index
    %10 = vector.load %arg7[%c0_11, %c0_12] : memref<1x128xf32, #tpu.memory_space<vmem>>, vector<1x128xf32>
    %c0_13 = arith.constant 0 : index
    %c0_14 = arith.constant 0 : index
    %11 = vector.load %arg5[%c0_13, %c0_14] : memref<128x384xbf16, #tpu.memory_space<vmem>>, vector<128x384xbf16>
    %c8_i32 = arith.constant 8 : i32
    %12 = arith.muli %arg1, %c8_i32 : i32
    %c0_15 = arith.constant 0 : index
    %c0_16 = arith.constant 0 : index
    %13 = vector.load %arg10[%c0_15, %c0_16] : memref<8x128xf32, #tpu.memory_space<vmem>>, vector<8x128xf32>
    %c0_i32_17 = arith.constant 0 : i32
    %c8_i32_18 = arith.constant 8 : i32
    %14 = arith.muli %c0_i32_17, %c8_i32_18 : i32
    %15 = tpu.assume_multiple %14, 8 : i32
    %16 = arith.index_cast %15 : i32 to index
    %c0_19 = arith.constant 0 : index
    %17 = vector.load %arg9[%16, %c0_19] : memref<64x384xf32, #tpu.memory_space<vmem>>, vector<8x384xf32>
    %18 = arith.truncf %13 : vector<8x128xf32> to vector<8x128xbf16>
    %cst_20 = arith.constant dense<0.000000e+00> : vector<8x384xf32>
    %19 = tpu.matmul %18, %11, %cst_20 {dimension_numbers = #tpu.dot_dimension_numbers<[1], [0], [0], [1], [0, 0, 1, 1], [], []>} : vector<8x128xbf16>, vector<128x384xbf16>, vector<8x384xf32> -> vector<8x384xf32>
    %20 = vector.broadcast %9 : vector<1x384xf32> to vector<8x384xf32>
    %21 = arith.addf %19, %20 : vector<8x384xf32>
    %22 = vector.extract_strided_slice %17 {offsets = [0, 0], sizes = [8, 128], strides = [1, 1]} : vector<8x384xf32> to vector<8x128xf32>
    %23 = vector.extract_strided_slice %17 {offsets = [0, 128], sizes = [8, 128], strides = [1, 1]} : vector<8x384xf32> to vector<8x128xf32>
    %24 = vector.extract_strided_slice %17 {offsets = [0, 256], sizes = [8, 128], strides = [1, 1]} : vector<8x384xf32> to vector<8x128xf32>
    %25 = vector.extract_strided_slice %21 {offsets = [0, 0], sizes = [8, 128], strides = [1, 1]} : vector<8x384xf32> to vector<8x128xf32>
    %26 = vector.extract_strided_slice %21 {offsets = [0, 128], sizes = [8, 128], strides = [1, 1]} : vector<8x384xf32> to vector<8x128xf32>
    %27 = vector.extract_strided_slice %21 {offsets = [0, 256], sizes = [8, 128], strides = [1, 1]} : vector<8x384xf32> to vector<8x128xf32>
    %28 = arith.addf %22, %25 : vector<8x128xf32>
    %cst_21 = arith.constant 5.000000e-01 : f32
    %29 = vector.broadcast %cst_21 : f32 to vector<8x128xf32>
    %30 = arith.mulf %29, %28 : vector<8x128xf32>
    %31 = math.tanh %30 : vector<8x128xf32>
    %cst_22 = arith.constant 1.000000e+00 : f32
    %32 = vector.broadcast %cst_22 : f32 to vector<8x128xf32>
    %33 = arith.addf %31, %32 : vector<8x128xf32>
    %cst_23 = arith.constant 5.000000e-01 : f32
    %34 = vector.broadcast %cst_23 : f32 to vector<8x128xf32>
    %35 = arith.mulf %34, %33 : vector<8x128xf32>
    %36 = arith.addf %23, %26 : vector<8x128xf32>
    %cst_24 = arith.constant 5.000000e-01 : f32
    %37 = vector.broadcast %cst_24 : f32 to vector<8x128xf32>
    %38 = arith.mulf %37, %36 : vector<8x128xf32>
    %39 = math.tanh %38 : vector<8x128xf32>
    %cst_25 = arith.constant 1.000000e+00 : f32
    %40 = vector.broadcast %cst_25 : f32 to vector<8x128xf32>
    %41 = arith.addf %39, %40 : vector<8x128xf32>
    %cst_26 = arith.constant 5.000000e-01 : f32
    %42 = vector.broadcast %cst_26 : f32 to vector<8x128xf32>
    %43 = arith.mulf %42, %41 : vector<8x128xf32>
    %44 = vector.broadcast %10 : vector<1x128xf32> to vector<8x128xf32>
    %45 = arith.addf %24, %44 : vector<8x128xf32>
    %46 = arith.mulf %35, %27 : vector<8x128xf32>
    %47 = arith.addf %45, %46 : vector<8x128xf32>
    %48 = math.tanh %47 : vector<8x128xf32>
    %cst_27 = arith.constant 1.000000e+00 : f32
    %49 = vector.broadcast %cst_27 : f32 to vector<8x128xf32>
    %50 = arith.subf %49, %43 : vector<8x128xf32>
    %51 = arith.mulf %50, %48 : vector<8x128xf32>
    %52 = arith.mulf %43, %13 : vector<8x128xf32>
    %53 = arith.addf %51, %52 : vector<8x128xf32>
    %54 = arith.addi %12, %c0_i32_17 : i32
    %55 = vector.broadcast %54 : i32 to vector<8x1xi32>
    %56 = arith.cmpi slt, %55, %8 : vector<8x1xi32>
    %57 = vector.shape_cast %56 : vector<8x1xi1> to vector<8x1xi1>
    %58 = vector.broadcast %57 : vector<8x1xi1> to vector<8x128xi1>
    %59 = arith.select %58, %53, %13 : vector<8x128xi1>, vector<8x128xf32>
    %c1_i32 = arith.constant 1 : i32
    %c8_i32_28 = arith.constant 8 : i32
    %60 = arith.muli %c1_i32, %c8_i32_28 : i32
    %61 = tpu.assume_multiple %60, 8 : i32
    %62 = arith.index_cast %61 : i32 to index
    %c0_29 = arith.constant 0 : index
    %63 = vector.load %arg9[%62, %c0_29] : memref<64x384xf32, #tpu.memory_space<vmem>>, vector<8x384xf32>
    %64 = arith.truncf %59 : vector<8x128xf32> to vector<8x128xbf16>
    %cst_30 = arith.constant dense<0.000000e+00> : vector<8x384xf32>
    %65 = tpu.matmul %64, %11, %cst_30 {dimension_numbers = #tpu.dot_dimension_numbers<[1], [0], [0], [1], [0, 0, 1, 1], [], []>} : vector<8x128xbf16>, vector<128x384xbf16>, vector<8x384xf32> -> vector<8x384xf32>
    %66 = vector.broadcast %9 : vector<1x384xf32> to vector<8x384xf32>
    %67 = arith.addf %65, %66 : vector<8x384xf32>
    %68 = vector.extract_strided_slice %63 {offsets = [0, 0], sizes = [8, 128], strides = [1, 1]} : vector<8x384xf32> to vector<8x128xf32>
    %69 = vector.extract_strided_slice %63 {offsets = [0, 128], sizes = [8, 128], strides = [1, 1]} : vector<8x384xf32> to vector<8x128xf32>
    %70 = vector.extract_strided_slice %63 {offsets = [0, 256], sizes = [8, 128], strides = [1, 1]} : vector<8x384xf32> to vector<8x128xf32>
    %71 = vector.extract_strided_slice %67 {offsets = [0, 0], sizes = [8, 128], strides = [1, 1]} : vector<8x384xf32> to vector<8x128xf32>
    %72 = vector.extract_strided_slice %67 {offsets = [0, 128], sizes = [8, 128], strides = [1, 1]} : vector<8x384xf32> to vector<8x128xf32>
    %73 = vector.extract_strided_slice %67 {offsets = [0, 256], sizes = [8, 128], strides = [1, 1]} : vector<8x384xf32> to vector<8x128xf32>
    %74 = arith.addf %68, %71 : vector<8x128xf32>
    %cst_31 = arith.constant 5.000000e-01 : f32
    %75 = vector.broadcast %cst_31 : f32 to vector<8x128xf32>
    %76 = arith.mulf %75, %74 : vector<8x128xf32>
    %77 = math.tanh %76 : vector<8x128xf32>
    %cst_32 = arith.constant 1.000000e+00 : f32
    %78 = vector.broadcast %cst_32 : f32 to vector<8x128xf32>
    %79 = arith.addf %77, %78 : vector<8x128xf32>
    %cst_33 = arith.constant 5.000000e-01 : f32
    %80 = vector.broadcast %cst_33 : f32 to vector<8x128xf32>
    %81 = arith.mulf %80, %79 : vector<8x128xf32>
    %82 = arith.addf %69, %72 : vector<8x128xf32>
    %cst_34 = arith.constant 5.000000e-01 : f32
    %83 = vector.broadcast %cst_34 : f32 to vector<8x128xf32>
    %84 = arith.mulf %83, %82 : vector<8x128xf32>
    %85 = math.tanh %84 : vector<8x128xf32>
    %cst_35 = arith.constant 1.000000e+00 : f32
    %86 = vector.broadcast %cst_35 : f32 to vector<8x128xf32>
    %87 = arith.addf %85, %86 : vector<8x128xf32>
    %cst_36 = arith.constant 5.000000e-01 : f32
    %88 = vector.broadcast %cst_36 : f32 to vector<8x128xf32>
    %89 = arith.mulf %88, %87 : vector<8x128xf32>
    %90 = vector.broadcast %10 : vector<1x128xf32> to vector<8x128xf32>
    %91 = arith.addf %70, %90 : vector<8x128xf32>
    %92 = arith.mulf %81, %73 : vector<8x128xf32>
    %93 = arith.addf %91, %92 : vector<8x128xf32>
    %94 = math.tanh %93 : vector<8x128xf32>
    %cst_37 = arith.constant 1.000000e+00 : f32
    %95 = vector.broadcast %cst_37 : f32 to vector<8x128xf32>
    %96 = arith.subf %95, %89 : vector<8x128xf32>
    %97 = arith.mulf %96, %94 : vector<8x128xf32>
    %98 = arith.mulf %89, %59 : vector<8x128xf32>
    %99 = arith.addf %97, %98 : vector<8x128xf32>
    %100 = arith.addi %12, %c1_i32 : i32
    %101 = vector.broadcast %100 : i32 to vector<8x1xi32>
    %102 = arith.cmpi slt, %101, %8 : vector<8x1xi32>
    %103 = vector.shape_cast %102 : vector<8x1xi1> to vector<8x1xi1>
    %104 = vector.broadcast %103 : vector<8x1xi1> to vector<8x128xi1>
    %105 = arith.select %104, %99, %59 : vector<8x128xi1>, vector<8x128xf32>
    %c2_i32 = arith.constant 2 : i32
    %c8_i32_38 = arith.constant 8 : i32
    %106 = arith.muli %c2_i32, %c8_i32_38 : i32
    %107 = tpu.assume_multiple %106, 8 : i32
    %108 = arith.index_cast %107 : i32 to index
    %c0_39 = arith.constant 0 : index
    %109 = vector.load %arg9[%108, %c0_39] : memref<64x384xf32, #tpu.memory_space<vmem>>, vector<8x384xf32>
    %110 = arith.truncf %105 : vector<8x128xf32> to vector<8x128xbf16>
    %cst_40 = arith.constant dense<0.000000e+00> : vector<8x384xf32>
    %111 = tpu.matmul %110, %11, %cst_40 {dimension_numbers = #tpu.dot_dimension_numbers<[1], [0], [0], [1], [0, 0, 1, 1], [], []>} : vector<8x128xbf16>, vector<128x384xbf16>, vector<8x384xf32> -> vector<8x384xf32>
    %112 = vector.broadcast %9 : vector<1x384xf32> to vector<8x384xf32>
    %113 = arith.addf %111, %112 : vector<8x384xf32>
    %114 = vector.extract_strided_slice %109 {offsets = [0, 0], sizes = [8, 128], strides = [1, 1]} : vector<8x384xf32> to vector<8x128xf32>
    %115 = vector.extract_strided_slice %109 {offsets = [0, 128], sizes = [8, 128], strides = [1, 1]} : vector<8x384xf32> to vector<8x128xf32>
    %116 = vector.extract_strided_slice %109 {offsets = [0, 256], sizes = [8, 128], strides = [1, 1]} : vector<8x384xf32> to vector<8x128xf32>
    %117 = vector.extract_strided_slice %113 {offsets = [0, 0], sizes = [8, 128], strides = [1, 1]} : vector<8x384xf32> to vector<8x128xf32>
    %118 = vector.extract_strided_slice %113 {offsets = [0, 128], sizes = [8, 128], strides = [1, 1]} : vector<8x384xf32> to vector<8x128xf32>
    %119 = vector.extract_strided_slice %113 {offsets = [0, 256], sizes = [8, 128], strides = [1, 1]} : vector<8x384xf32> to vector<8x128xf32>
    %120 = arith.addf %114, %117 : vector<8x128xf32>
    %cst_41 = arith.constant 5.000000e-01 : f32
    %121 = vector.broadcast %cst_41 : f32 to vector<8x128xf32>
    %122 = arith.mulf %121, %120 : vector<8x128xf32>
    %123 = math.tanh %122 : vector<8x128xf32>
    %cst_42 = arith.constant 1.000000e+00 : f32
    %124 = vector.broadcast %cst_42 : f32 to vector<8x128xf32>
    %125 = arith.addf %123, %124 : vector<8x128xf32>
    %cst_43 = arith.constant 5.000000e-01 : f32
    %126 = vector.broadcast %cst_43 : f32 to vector<8x128xf32>
    %127 = arith.mulf %126, %125 : vector<8x128xf32>
    %128 = arith.addf %115, %118 : vector<8x128xf32>
    %cst_44 = arith.constant 5.000000e-01 : f32
    %129 = vector.broadcast %cst_44 : f32 to vector<8x128xf32>
    %130 = arith.mulf %129, %128 : vector<8x128xf32>
    %131 = math.tanh %130 : vector<8x128xf32>
    %cst_45 = arith.constant 1.000000e+00 : f32
    %132 = vector.broadcast %cst_45 : f32 to vector<8x128xf32>
    %133 = arith.addf %131, %132 : vector<8x128xf32>
    %cst_46 = arith.constant 5.000000e-01 : f32
    %134 = vector.broadcast %cst_46 : f32 to vector<8x128xf32>
    %135 = arith.mulf %134, %133 : vector<8x128xf32>
    %136 = vector.broadcast %10 : vector<1x128xf32> to vector<8x128xf32>
    %137 = arith.addf %116, %136 : vector<8x128xf32>
    %138 = arith.mulf %127, %119 : vector<8x128xf32>
    %139 = arith.addf %137, %138 : vector<8x128xf32>
    %140 = math.tanh %139 : vector<8x128xf32>
    %cst_47 = arith.constant 1.000000e+00 : f32
    %141 = vector.broadcast %cst_47 : f32 to vector<8x128xf32>
    %142 = arith.subf %141, %135 : vector<8x128xf32>
    %143 = arith.mulf %142, %140 : vector<8x128xf32>
    %144 = arith.mulf %135, %105 : vector<8x128xf32>
    %145 = arith.addf %143, %144 : vector<8x128xf32>
    %146 = arith.addi %12, %c2_i32 : i32
    %147 = vector.broadcast %146 : i32 to vector<8x1xi32>
    %148 = arith.cmpi slt, %147, %8 : vector<8x1xi32>
    %149 = vector.shape_cast %148 : vector<8x1xi1> to vector<8x1xi1>
    %150 = vector.broadcast %149 : vector<8x1xi1> to vector<8x128xi1>
    %151 = arith.select %150, %145, %105 : vector<8x128xi1>, vector<8x128xf32>
    %c3_i32 = arith.constant 3 : i32
    %c8_i32_48 = arith.constant 8 : i32
    %152 = arith.muli %c3_i32, %c8_i32_48 : i32
    %153 = tpu.assume_multiple %152, 8 : i32
    %154 = arith.index_cast %153 : i32 to index
    %c0_49 = arith.constant 0 : index
    %155 = vector.load %arg9[%154, %c0_49] : memref<64x384xf32, #tpu.memory_space<vmem>>, vector<8x384xf32>
    %156 = arith.truncf %151 : vector<8x128xf32> to vector<8x128xbf16>
    %cst_50 = arith.constant dense<0.000000e+00> : vector<8x384xf32>
    %157 = tpu.matmul %156, %11, %cst_50 {dimension_numbers = #tpu.dot_dimension_numbers<[1], [0], [0], [1], [0, 0, 1, 1], [], []>} : vector<8x128xbf16>, vector<128x384xbf16>, vector<8x384xf32> -> vector<8x384xf32>
    %158 = vector.broadcast %9 : vector<1x384xf32> to vector<8x384xf32>
    %159 = arith.addf %157, %158 : vector<8x384xf32>
    %160 = vector.extract_strided_slice %155 {offsets = [0, 0], sizes = [8, 128], strides = [1, 1]} : vector<8x384xf32> to vector<8x128xf32>
    %161 = vector.extract_strided_slice %155 {offsets = [0, 128], sizes = [8, 128], strides = [1, 1]} : vector<8x384xf32> to vector<8x128xf32>
    %162 = vector.extract_strided_slice %155 {offsets = [0, 256], sizes = [8, 128], strides = [1, 1]} : vector<8x384xf32> to vector<8x128xf32>
    %163 = vector.extract_strided_slice %159 {offsets = [0, 0], sizes = [8, 128], strides = [1, 1]} : vector<8x384xf32> to vector<8x128xf32>
    %164 = vector.extract_strided_slice %159 {offsets = [0, 128], sizes = [8, 128], strides = [1, 1]} : vector<8x384xf32> to vector<8x128xf32>
    %165 = vector.extract_strided_slice %159 {offsets = [0, 256], sizes = [8, 128], strides = [1, 1]} : vector<8x384xf32> to vector<8x128xf32>
    %166 = arith.addf %160, %163 : vector<8x128xf32>
    %cst_51 = arith.constant 5.000000e-01 : f32
    %167 = vector.broadcast %cst_51 : f32 to vector<8x128xf32>
    %168 = arith.mulf %167, %166 : vector<8x128xf32>
    %169 = math.tanh %168 : vector<8x128xf32>
    %cst_52 = arith.constant 1.000000e+00 : f32
    %170 = vector.broadcast %cst_52 : f32 to vector<8x128xf32>
    %171 = arith.addf %169, %170 : vector<8x128xf32>
    %cst_53 = arith.constant 5.000000e-01 : f32
    %172 = vector.broadcast %cst_53 : f32 to vector<8x128xf32>
    %173 = arith.mulf %172, %171 : vector<8x128xf32>
    %174 = arith.addf %161, %164 : vector<8x128xf32>
    %cst_54 = arith.constant 5.000000e-01 : f32
    %175 = vector.broadcast %cst_54 : f32 to vector<8x128xf32>
    %176 = arith.mulf %175, %174 : vector<8x128xf32>
    %177 = math.tanh %176 : vector<8x128xf32>
    %cst_55 = arith.constant 1.000000e+00 : f32
    %178 = vector.broadcast %cst_55 : f32 to vector<8x128xf32>
    %179 = arith.addf %177, %178 : vector<8x128xf32>
    %cst_56 = arith.constant 5.000000e-01 : f32
    %180 = vector.broadcast %cst_56 : f32 to vector<8x128xf32>
    %181 = arith.mulf %180, %179 : vector<8x128xf32>
    %182 = vector.broadcast %10 : vector<1x128xf32> to vector<8x128xf32>
    %183 = arith.addf %162, %182 : vector<8x128xf32>
    %184 = arith.mulf %173, %165 : vector<8x128xf32>
    %185 = arith.addf %183, %184 : vector<8x128xf32>
    %186 = math.tanh %185 : vector<8x128xf32>
    %cst_57 = arith.constant 1.000000e+00 : f32
    %187 = vector.broadcast %cst_57 : f32 to vector<8x128xf32>
    %188 = arith.subf %187, %181 : vector<8x128xf32>
    %189 = arith.mulf %188, %186 : vector<8x128xf32>
    %190 = arith.mulf %181, %151 : vector<8x128xf32>
    %191 = arith.addf %189, %190 : vector<8x128xf32>
    %192 = arith.addi %12, %c3_i32 : i32
    %193 = vector.broadcast %192 : i32 to vector<8x1xi32>
    %194 = arith.cmpi slt, %193, %8 : vector<8x1xi32>
    %195 = vector.shape_cast %194 : vector<8x1xi1> to vector<8x1xi1>
    %196 = vector.broadcast %195 : vector<8x1xi1> to vector<8x128xi1>
    %197 = arith.select %196, %191, %151 : vector<8x128xi1>, vector<8x128xf32>
    %c4_i32 = arith.constant 4 : i32
    %c8_i32_58 = arith.constant 8 : i32
    %198 = arith.muli %c4_i32, %c8_i32_58 : i32
    %199 = tpu.assume_multiple %198, 8 : i32
    %200 = arith.index_cast %199 : i32 to index
    %c0_59 = arith.constant 0 : index
    %201 = vector.load %arg9[%200, %c0_59] : memref<64x384xf32, #tpu.memory_space<vmem>>, vector<8x384xf32>
    %202 = arith.truncf %197 : vector<8x128xf32> to vector<8x128xbf16>
    %cst_60 = arith.constant dense<0.000000e+00> : vector<8x384xf32>
    %203 = tpu.matmul %202, %11, %cst_60 {dimension_numbers = #tpu.dot_dimension_numbers<[1], [0], [0], [1], [0, 0, 1, 1], [], []>} : vector<8x128xbf16>, vector<128x384xbf16>, vector<8x384xf32> -> vector<8x384xf32>
    %204 = vector.broadcast %9 : vector<1x384xf32> to vector<8x384xf32>
    %205 = arith.addf %203, %204 : vector<8x384xf32>
    %206 = vector.extract_strided_slice %201 {offsets = [0, 0], sizes = [8, 128], strides = [1, 1]} : vector<8x384xf32> to vector<8x128xf32>
    %207 = vector.extract_strided_slice %201 {offsets = [0, 128], sizes = [8, 128], strides = [1, 1]} : vector<8x384xf32> to vector<8x128xf32>
    %208 = vector.extract_strided_slice %201 {offsets = [0, 256], sizes = [8, 128], strides = [1, 1]} : vector<8x384xf32> to vector<8x128xf32>
    %209 = vector.extract_strided_slice %205 {offsets = [0, 0], sizes = [8, 128], strides = [1, 1]} : vector<8x384xf32> to vector<8x128xf32>
    %210 = vector.extract_strided_slice %205 {offsets = [0, 128], sizes = [8, 128], strides = [1, 1]} : vector<8x384xf32> to vector<8x128xf32>
    %211 = vector.extract_strided_slice %205 {offsets = [0, 256], sizes = [8, 128], strides = [1, 1]} : vector<8x384xf32> to vector<8x128xf32>
    %212 = arith.addf %206, %209 : vector<8x128xf32>
    %cst_61 = arith.constant 5.000000e-01 : f32
    %213 = vector.broadcast %cst_61 : f32 to vector<8x128xf32>
    %214 = arith.mulf %213, %212 : vector<8x128xf32>
    %215 = math.tanh %214 : vector<8x128xf32>
    %cst_62 = arith.constant 1.000000e+00 : f32
    %216 = vector.broadcast %cst_62 : f32 to vector<8x128xf32>
    %217 = arith.addf %215, %216 : vector<8x128xf32>
    %cst_63 = arith.constant 5.000000e-01 : f32
    %218 = vector.broadcast %cst_63 : f32 to vector<8x128xf32>
    %219 = arith.mulf %218, %217 : vector<8x128xf32>
    %220 = arith.addf %207, %210 : vector<8x128xf32>
    %cst_64 = arith.constant 5.000000e-01 : f32
    %221 = vector.broadcast %cst_64 : f32 to vector<8x128xf32>
    %222 = arith.mulf %221, %220 : vector<8x128xf32>
    %223 = math.tanh %222 : vector<8x128xf32>
    %cst_65 = arith.constant 1.000000e+00 : f32
    %224 = vector.broadcast %cst_65 : f32 to vector<8x128xf32>
    %225 = arith.addf %223, %224 : vector<8x128xf32>
    %cst_66 = arith.constant 5.000000e-01 : f32
    %226 = vector.broadcast %cst_66 : f32 to vector<8x128xf32>
    %227 = arith.mulf %226, %225 : vector<8x128xf32>
    %228 = vector.broadcast %10 : vector<1x128xf32> to vector<8x128xf32>
    %229 = arith.addf %208, %228 : vector<8x128xf32>
    %230 = arith.mulf %219, %211 : vector<8x128xf32>
    %231 = arith.addf %229, %230 : vector<8x128xf32>
    %232 = math.tanh %231 : vector<8x128xf32>
    %cst_67 = arith.constant 1.000000e+00 : f32
    %233 = vector.broadcast %cst_67 : f32 to vector<8x128xf32>
    %234 = arith.subf %233, %227 : vector<8x128xf32>
    %235 = arith.mulf %234, %232 : vector<8x128xf32>
    %236 = arith.mulf %227, %197 : vector<8x128xf32>
    %237 = arith.addf %235, %236 : vector<8x128xf32>
    %238 = arith.addi %12, %c4_i32 : i32
    %239 = vector.broadcast %238 : i32 to vector<8x1xi32>
    %240 = arith.cmpi slt, %239, %8 : vector<8x1xi32>
    %241 = vector.shape_cast %240 : vector<8x1xi1> to vector<8x1xi1>
    %242 = vector.broadcast %241 : vector<8x1xi1> to vector<8x128xi1>
    %243 = arith.select %242, %237, %197 : vector<8x128xi1>, vector<8x128xf32>
    %c5_i32 = arith.constant 5 : i32
    %c8_i32_68 = arith.constant 8 : i32
    %244 = arith.muli %c5_i32, %c8_i32_68 : i32
    %245 = tpu.assume_multiple %244, 8 : i32
    %246 = arith.index_cast %245 : i32 to index
    %c0_69 = arith.constant 0 : index
    %247 = vector.load %arg9[%246, %c0_69] : memref<64x384xf32, #tpu.memory_space<vmem>>, vector<8x384xf32>
    %248 = arith.truncf %243 : vector<8x128xf32> to vector<8x128xbf16>
    %cst_70 = arith.constant dense<0.000000e+00> : vector<8x384xf32>
    %249 = tpu.matmul %248, %11, %cst_70 {dimension_numbers = #tpu.dot_dimension_numbers<[1], [0], [0], [1], [0, 0, 1, 1], [], []>} : vector<8x128xbf16>, vector<128x384xbf16>, vector<8x384xf32> -> vector<8x384xf32>
    %250 = vector.broadcast %9 : vector<1x384xf32> to vector<8x384xf32>
    %251 = arith.addf %249, %250 : vector<8x384xf32>
    %252 = vector.extract_strided_slice %247 {offsets = [0, 0], sizes = [8, 128], strides = [1, 1]} : vector<8x384xf32> to vector<8x128xf32>
    %253 = vector.extract_strided_slice %247 {offsets = [0, 128], sizes = [8, 128], strides = [1, 1]} : vector<8x384xf32> to vector<8x128xf32>
    %254 = vector.extract_strided_slice %247 {offsets = [0, 256], sizes = [8, 128], strides = [1, 1]} : vector<8x384xf32> to vector<8x128xf32>
    %255 = vector.extract_strided_slice %251 {offsets = [0, 0], sizes = [8, 128], strides = [1, 1]} : vector<8x384xf32> to vector<8x128xf32>
    %256 = vector.extract_strided_slice %251 {offsets = [0, 128], sizes = [8, 128], strides = [1, 1]} : vector<8x384xf32> to vector<8x128xf32>
    %257 = vector.extract_strided_slice %251 {offsets = [0, 256], sizes = [8, 128], strides = [1, 1]} : vector<8x384xf32> to vector<8x128xf32>
    %258 = arith.addf %252, %255 : vector<8x128xf32>
    %cst_71 = arith.constant 5.000000e-01 : f32
    %259 = vector.broadcast %cst_71 : f32 to vector<8x128xf32>
    %260 = arith.mulf %259, %258 : vector<8x128xf32>
    %261 = math.tanh %260 : vector<8x128xf32>
    %cst_72 = arith.constant 1.000000e+00 : f32
    %262 = vector.broadcast %cst_72 : f32 to vector<8x128xf32>
    %263 = arith.addf %261, %262 : vector<8x128xf32>
    %cst_73 = arith.constant 5.000000e-01 : f32
    %264 = vector.broadcast %cst_73 : f32 to vector<8x128xf32>
    %265 = arith.mulf %264, %263 : vector<8x128xf32>
    %266 = arith.addf %253, %256 : vector<8x128xf32>
    %cst_74 = arith.constant 5.000000e-01 : f32
    %267 = vector.broadcast %cst_74 : f32 to vector<8x128xf32>
    %268 = arith.mulf %267, %266 : vector<8x128xf32>
    %269 = math.tanh %268 : vector<8x128xf32>
    %cst_75 = arith.constant 1.000000e+00 : f32
    %270 = vector.broadcast %cst_75 : f32 to vector<8x128xf32>
    %271 = arith.addf %269, %270 : vector<8x128xf32>
    %cst_76 = arith.constant 5.000000e-01 : f32
    %272 = vector.broadcast %cst_76 : f32 to vector<8x128xf32>
    %273 = arith.mulf %272, %271 : vector<8x128xf32>
    %274 = vector.broadcast %10 : vector<1x128xf32> to vector<8x128xf32>
    %275 = arith.addf %254, %274 : vector<8x128xf32>
    %276 = arith.mulf %265, %257 : vector<8x128xf32>
    %277 = arith.addf %275, %276 : vector<8x128xf32>
    %278 = math.tanh %277 : vector<8x128xf32>
    %cst_77 = arith.constant 1.000000e+00 : f32
    %279 = vector.broadcast %cst_77 : f32 to vector<8x128xf32>
    %280 = arith.subf %279, %273 : vector<8x128xf32>
    %281 = arith.mulf %280, %278 : vector<8x128xf32>
    %282 = arith.mulf %273, %243 : vector<8x128xf32>
    %283 = arith.addf %281, %282 : vector<8x128xf32>
    %284 = arith.addi %12, %c5_i32 : i32
    %285 = vector.broadcast %284 : i32 to vector<8x1xi32>
    %286 = arith.cmpi slt, %285, %8 : vector<8x1xi32>
    %287 = vector.shape_cast %286 : vector<8x1xi1> to vector<8x1xi1>
    %288 = vector.broadcast %287 : vector<8x1xi1> to vector<8x128xi1>
    %289 = arith.select %288, %283, %243 : vector<8x128xi1>, vector<8x128xf32>
    %c6_i32 = arith.constant 6 : i32
    %c8_i32_78 = arith.constant 8 : i32
    %290 = arith.muli %c6_i32, %c8_i32_78 : i32
    %291 = tpu.assume_multiple %290, 8 : i32
    %292 = arith.index_cast %291 : i32 to index
    %c0_79 = arith.constant 0 : index
    %293 = vector.load %arg9[%292, %c0_79] : memref<64x384xf32, #tpu.memory_space<vmem>>, vector<8x384xf32>
    %294 = arith.truncf %289 : vector<8x128xf32> to vector<8x128xbf16>
    %cst_80 = arith.constant dense<0.000000e+00> : vector<8x384xf32>
    %295 = tpu.matmul %294, %11, %cst_80 {dimension_numbers = #tpu.dot_dimension_numbers<[1], [0], [0], [1], [0, 0, 1, 1], [], []>} : vector<8x128xbf16>, vector<128x384xbf16>, vector<8x384xf32> -> vector<8x384xf32>
    %296 = vector.broadcast %9 : vector<1x384xf32> to vector<8x384xf32>
    %297 = arith.addf %295, %296 : vector<8x384xf32>
    %298 = vector.extract_strided_slice %293 {offsets = [0, 0], sizes = [8, 128], strides = [1, 1]} : vector<8x384xf32> to vector<8x128xf32>
    %299 = vector.extract_strided_slice %293 {offsets = [0, 128], sizes = [8, 128], strides = [1, 1]} : vector<8x384xf32> to vector<8x128xf32>
    %300 = vector.extract_strided_slice %293 {offsets = [0, 256], sizes = [8, 128], strides = [1, 1]} : vector<8x384xf32> to vector<8x128xf32>
    %301 = vector.extract_strided_slice %297 {offsets = [0, 0], sizes = [8, 128], strides = [1, 1]} : vector<8x384xf32> to vector<8x128xf32>
    %302 = vector.extract_strided_slice %297 {offsets = [0, 128], sizes = [8, 128], strides = [1, 1]} : vector<8x384xf32> to vector<8x128xf32>
    %303 = vector.extract_strided_slice %297 {offsets = [0, 256], sizes = [8, 128], strides = [1, 1]} : vector<8x384xf32> to vector<8x128xf32>
    %304 = arith.addf %298, %301 : vector<8x128xf32>
    %cst_81 = arith.constant 5.000000e-01 : f32
    %305 = vector.broadcast %cst_81 : f32 to vector<8x128xf32>
    %306 = arith.mulf %305, %304 : vector<8x128xf32>
    %307 = math.tanh %306 : vector<8x128xf32>
    %cst_82 = arith.constant 1.000000e+00 : f32
    %308 = vector.broadcast %cst_82 : f32 to vector<8x128xf32>
    %309 = arith.addf %307, %308 : vector<8x128xf32>
    %cst_83 = arith.constant 5.000000e-01 : f32
    %310 = vector.broadcast %cst_83 : f32 to vector<8x128xf32>
    %311 = arith.mulf %310, %309 : vector<8x128xf32>
    %312 = arith.addf %299, %302 : vector<8x128xf32>
    %cst_84 = arith.constant 5.000000e-01 : f32
    %313 = vector.broadcast %cst_84 : f32 to vector<8x128xf32>
    %314 = arith.mulf %313, %312 : vector<8x128xf32>
    %315 = math.tanh %314 : vector<8x128xf32>
    %cst_85 = arith.constant 1.000000e+00 : f32
    %316 = vector.broadcast %cst_85 : f32 to vector<8x128xf32>
    %317 = arith.addf %315, %316 : vector<8x128xf32>
    %cst_86 = arith.constant 5.000000e-01 : f32
    %318 = vector.broadcast %cst_86 : f32 to vector<8x128xf32>
    %319 = arith.mulf %318, %317 : vector<8x128xf32>
    %320 = vector.broadcast %10 : vector<1x128xf32> to vector<8x128xf32>
    %321 = arith.addf %300, %320 : vector<8x128xf32>
    %322 = arith.mulf %311, %303 : vector<8x128xf32>
    %323 = arith.addf %321, %322 : vector<8x128xf32>
    %324 = math.tanh %323 : vector<8x128xf32>
    %cst_87 = arith.constant 1.000000e+00 : f32
    %325 = vector.broadcast %cst_87 : f32 to vector<8x128xf32>
    %326 = arith.subf %325, %319 : vector<8x128xf32>
    %327 = arith.mulf %326, %324 : vector<8x128xf32>
    %328 = arith.mulf %319, %289 : vector<8x128xf32>
    %329 = arith.addf %327, %328 : vector<8x128xf32>
    %330 = arith.addi %12, %c6_i32 : i32
    %331 = vector.broadcast %330 : i32 to vector<8x1xi32>
    %332 = arith.cmpi slt, %331, %8 : vector<8x1xi32>
    %333 = vector.shape_cast %332 : vector<8x1xi1> to vector<8x1xi1>
    %334 = vector.broadcast %333 : vector<8x1xi1> to vector<8x128xi1>
    %335 = arith.select %334, %329, %289 : vector<8x128xi1>, vector<8x128xf32>
    %c7_i32 = arith.constant 7 : i32
    %c8_i32_88 = arith.constant 8 : i32
    %336 = arith.muli %c7_i32, %c8_i32_88 : i32
    %337 = tpu.assume_multiple %336, 8 : i32
    %338 = arith.index_cast %337 : i32 to index
    %c0_89 = arith.constant 0 : index
    %339 = vector.load %arg9[%338, %c0_89] : memref<64x384xf32, #tpu.memory_space<vmem>>, vector<8x384xf32>
    %340 = arith.truncf %335 : vector<8x128xf32> to vector<8x128xbf16>
    %cst_90 = arith.constant dense<0.000000e+00> : vector<8x384xf32>
    %341 = tpu.matmul %340, %11, %cst_90 {dimension_numbers = #tpu.dot_dimension_numbers<[1], [0], [0], [1], [0, 0, 1, 1], [], []>} : vector<8x128xbf16>, vector<128x384xbf16>, vector<8x384xf32> -> vector<8x384xf32>
    %342 = vector.broadcast %9 : vector<1x384xf32> to vector<8x384xf32>
    %343 = arith.addf %341, %342 : vector<8x384xf32>
    %344 = vector.extract_strided_slice %339 {offsets = [0, 0], sizes = [8, 128], strides = [1, 1]} : vector<8x384xf32> to vector<8x128xf32>
    %345 = vector.extract_strided_slice %339 {offsets = [0, 128], sizes = [8, 128], strides = [1, 1]} : vector<8x384xf32> to vector<8x128xf32>
    %346 = vector.extract_strided_slice %339 {offsets = [0, 256], sizes = [8, 128], strides = [1, 1]} : vector<8x384xf32> to vector<8x128xf32>
    %347 = vector.extract_strided_slice %343 {offsets = [0, 0], sizes = [8, 128], strides = [1, 1]} : vector<8x384xf32> to vector<8x128xf32>
    %348 = vector.extract_strided_slice %343 {offsets = [0, 128], sizes = [8, 128], strides = [1, 1]} : vector<8x384xf32> to vector<8x128xf32>
    %349 = vector.extract_strided_slice %343 {offsets = [0, 256], sizes = [8, 128], strides = [1, 1]} : vector<8x384xf32> to vector<8x128xf32>
    %350 = arith.addf %344, %347 : vector<8x128xf32>
    %cst_91 = arith.constant 5.000000e-01 : f32
    %351 = vector.broadcast %cst_91 : f32 to vector<8x128xf32>
    %352 = arith.mulf %351, %350 : vector<8x128xf32>
    %353 = math.tanh %352 : vector<8x128xf32>
    %cst_92 = arith.constant 1.000000e+00 : f32
    %354 = vector.broadcast %cst_92 : f32 to vector<8x128xf32>
    %355 = arith.addf %353, %354 : vector<8x128xf32>
    %cst_93 = arith.constant 5.000000e-01 : f32
    %356 = vector.broadcast %cst_93 : f32 to vector<8x128xf32>
    %357 = arith.mulf %356, %355 : vector<8x128xf32>
    %358 = arith.addf %345, %348 : vector<8x128xf32>
    %cst_94 = arith.constant 5.000000e-01 : f32
    %359 = vector.broadcast %cst_94 : f32 to vector<8x128xf32>
    %360 = arith.mulf %359, %358 : vector<8x128xf32>
    %361 = math.tanh %360 : vector<8x128xf32>
    %cst_95 = arith.constant 1.000000e+00 : f32
    %362 = vector.broadcast %cst_95 : f32 to vector<8x128xf32>
    %363 = arith.addf %361, %362 : vector<8x128xf32>
    %cst_96 = arith.constant 5.000000e-01 : f32
    %364 = vector.broadcast %cst_96 : f32 to vector<8x128xf32>
    %365 = arith.mulf %364, %363 : vector<8x128xf32>
    %366 = vector.broadcast %10 : vector<1x128xf32> to vector<8x128xf32>
    %367 = arith.addf %346, %366 : vector<8x128xf32>
    %368 = arith.mulf %357, %349 : vector<8x128xf32>
    %369 = arith.addf %367, %368 : vector<8x128xf32>
    %370 = math.tanh %369 : vector<8x128xf32>
    %cst_97 = arith.constant 1.000000e+00 : f32
    %371 = vector.broadcast %cst_97 : f32 to vector<8x128xf32>
    %372 = arith.subf %371, %365 : vector<8x128xf32>
    %373 = arith.mulf %372, %370 : vector<8x128xf32>
    %374 = arith.mulf %365, %335 : vector<8x128xf32>
    %375 = arith.addf %373, %374 : vector<8x128xf32>
    %376 = arith.addi %12, %c7_i32 : i32
    %377 = vector.broadcast %376 : i32 to vector<8x1xi32>
    %378 = arith.cmpi slt, %377, %8 : vector<8x1xi32>
    %379 = vector.shape_cast %378 : vector<8x1xi1> to vector<8x1xi1>
    %380 = vector.broadcast %379 : vector<8x1xi1> to vector<8x128xi1>
    %381 = arith.select %380, %375, %335 : vector<8x128xi1>, vector<8x128xf32>
    %c8_i32_98 = arith.constant 8 : i32
    %c0_99 = arith.constant 0 : index
    %c0_100 = arith.constant 0 : index
    %382 = vector.load %arg10[%c0_99, %c0_100] : memref<8x128xf32, #tpu.memory_space<vmem>>, vector<8x128xf32>
    tpu.vector_store %arg10[%c0_99, %c0_100], %381 {strides = array<i32>} : memref<8x128xf32, #tpu.memory_space<vmem>>, vector<8x128xf32>,
    %c0_i32_101 = arith.constant 0 : i32
    %383 = arith.cmpi eq, %arg1, %c0_i32_101 : i32
    %384 = arith.extui %383 : i1 to i32
    %c0_i32_102 = arith.constant 0 : i32
    %385 = arith.cmpi ne, %384, %c0_i32_102 : i32
    scf.if %385 {
      %c0_103 = arith.constant 0 : index
      %c0_104 = arith.constant 0 : index
      %386 = vector.load %arg8[%c0_103, %c0_104] : memref<8x128xf32, #tpu.memory_space<vmem>>, vector<8x128xf32>
      tpu.vector_store %arg8[%c0_103, %c0_104], %381 {strides = array<i32>} : memref<8x128xf32, #tpu.memory_space<vmem>>, vector<8x128xf32>,
    } else {
    }
    return
  }
  func.func @transform_0(%arg0: i32, %arg1: i32) -> (i32, i32) {
    %c0_i32 = arith.constant 0 : i32
    %c0_i32_0 = arith.constant 0 : i32
    return %arg0, %c0_i32 : i32, i32
  }
  func.func @transform_1(%arg0: i32, %arg1: i32) -> (i32, i32, i32) {
    %c0_i32 = arith.constant 0 : i32
    %c0_i32_0 = arith.constant 0 : i32
    return %arg0, %arg1, %c0_i32 : i32, i32, i32
  }
  func.func @transform_2(%arg0: i32, %arg1: i32) -> (i32, i32) {
    %c0_i32 = arith.constant 0 : i32
    %c0_i32_0 = arith.constant 0 : i32
    %c0_i32_1 = arith.constant 0 : i32
    return %c0_i32, %c0_i32_0 : i32, i32
  }
  func.func @transform_3(%arg0: i32, %arg1: i32) -> (i32, i32) {
    %c0_i32 = arith.constant 0 : i32
    %c0_i32_0 = arith.constant 0 : i32
    %c0_i32_1 = arith.constant 0 : i32
    return %c0_i32, %c0_i32_0 : i32, i32
  }
  func.func @transform_4(%arg0: i32, %arg1: i32) -> (i32, i32) {
    %c0_i32 = arith.constant 0 : i32
    %c0_i32_0 = arith.constant 0 : i32
    %c0_i32_1 = arith.constant 0 : i32
    return %c0_i32, %c0_i32_0 : i32, i32
  }
  func.func @transform_5(%arg0: i32, %arg1: i32) -> (i32, i32) {
    %c0_i32 = arith.constant 0 : i32
    %c0_i32_0 = arith.constant 0 : i32
    %c0_i32_1 = arith.constant 0 : i32
    return %c0_i32, %c0_i32_0 : i32, i32
  }
  func.func @transform_6(%arg0: i32, %arg1: i32) -> (i32, i32) {
    %c0_i32 = arith.constant 0 : i32
    %c0_i32_0 = arith.constant 0 : i32
    return %arg0, %c0_i32 : i32, i32
  }
}

</mosaic_0001>

<llo_original>
// kernel: tpu_custom_call.1
$region0: #{tpu_custom_call.1}
  #allocation0 [shape = 'u32[]', space=smem, size = 0x4, offset = 0x4, fixed_abs, tag = 'smem constant byte address 0x4 - core index']
  #allocation1 [shape = 'u32[72,128]{1,0:T(1,128)}', space=vmem, size = 0x9000, scoped, tag = 'internal scratch']
  #allocation2 [shape = 'f32[64,384]{1,0:T(8,128)}', space=vmem, size = 0x18000, scoped, tag = 'scratch operand']
  #allocation3 [shape = 'f32[8,128]{1,0:T(8,128)}', space=vmem, size = 0x1000, scoped, tag = 'scratch operand']
  %s0 = inlined_call_operand.vmem [shape: s32[8,1], index: 0, kind: input, shape index: {}]
  %s1 = inlined_call_operand.vmem [shape: bf16[1,64,32], index: 1, kind: input, shape index: {}]
  %s2 = inlined_call_operand.vmem [shape: bf16[32,384], index: 2, kind: input, shape index: {}]
  %s3 = inlined_call_operand.hbm [shape: bf16[128,384], index: 3, kind: input, shape index: {}]
  %s4 = inlined_call_operand.vmem [shape: f32[1,384], index: 4, kind: input, shape index: {}]
  %s5 = inlined_call_operand.vmem [shape: f32[1,128], index: 5, kind: input, shape index: {}]
  %s6 = inlined_call_operand.hbm [shape: f32[8,128], index: 6, kind: output, shape index: {}]
  %s7 = sld [smem:[#allocation0]]
  $region46: #{tpu_custom_call.1} parent=0
    _
  %s9 = ssub.s32 1, %s7
  %s10 = scalar_select 0, %s9, %s7
  $region1: #{tpu_custom_call.1} parent=0
    #allocation4 [shape = 'u8[98304]{0}', space=vmem, size = 0x18000, scoped, tag = 'input window, operand 3, single buffered']
    #allocation5 [shape = 's32[1]{0}', space=sflag, size = 0x4, scoped, tag = 'scoped memory for tpu_custom_call.1']
    #allocation6 [shape = 's32[1]{0}', space=sflag, size = 0x4, scoped, tag = 'scoped memory for tpu_custom_call.1']
    #allocation7 [shape = 'u8[4096]{0}', space=vmem, size = 0x1000, scoped, tag = 'output window, operand 0, single buffered']
    %11 = vsyncpa [#allocation5], 0
    %12 = vsyncpa [#allocation6], 0
    // Predicated region
    $region2: #{tpu_custom_call.1} parent=1 // pred_check
      _
    $region3: #{tpu_custom_call.1} parent=1 // pred_check_branch
      %14 = sbr.rel (0) target = $region5
    $region4: #{tpu_custom_call.1} parent=1 // pred_region
      _
    $region5: #{tpu_custom_call.1} parent=1 // pred_fallthru
      _
    // Predicated region
    $region6: #{tpu_custom_call.1} parent=1 // pred_check
      _
    $region7: #{tpu_custom_call.1} parent=1 // pred_check_branch
      %16 = sbr.rel (0) target = $region9
    $region8: #{tpu_custom_call.1} parent=1 // pred_region
      _
    $region9: #{tpu_custom_call.1} parent=1 // pred_fallthru
      _
    // Predicated region
    $region10: #{tpu_custom_call.1} parent=1 // pred_check
      _
    $region11: #{tpu_custom_call.1} parent=1 // pred_check_branch
      %18 = sbr.rel (0) target = $region13
    $region12: #{tpu_custom_call.1} parent=1 // pred_region
      _
    $region13: #{tpu_custom_call.1} parent=1 // pred_fallthru
      _
    // Predicated region
    $region14: #{tpu_custom_call.1} parent=1 // pred_check
      _
    $region15: #{tpu_custom_call.1} parent=1 // pred_check_branch
      %20 = sbr.rel (0) target = $region17
    $region16: #{tpu_custom_call.1} parent=1 // pred_region
      %22 = vsyncadd [#allocation5], 0
      %s23 = sshll.u32 %s3, 4
      %s24 = int_to_ptr.hbm [resolvable:$true] %s23
      %s25 = sshll.u32 [#allocation4], 4
      %s26 = int_to_ptr.vmem [resolvable:$true] %s25
      %31 = dma.hbm_to_vmem [thread:$0]  %s24, 3072, %s26, [#allocation5], 192, 192, 12
    $region17: #{tpu_custom_call.1} parent=1 // pred_fallthru
      _
    // Predicated region
    $region18: #{tpu_custom_call.1} parent=1 // pred_check
      _
    $region19: #{tpu_custom_call.1} parent=1 // pred_check_branch
      %33 = sbr.rel (0) target = $region21
    $region20: #{tpu_custom_call.1} parent=1 // pred_region
      _
    $region21: #{tpu_custom_call.1} parent=1 // pred_fallthru
      _
    // Predicated region
    $region22: #{tpu_custom_call.1} parent=1 // pred_check
      _
    $region23: #{tpu_custom_call.1} parent=1 // pred_check_branch
      %35 = sbr.rel (0) target = $region25
    $region24: #{tpu_custom_call.1} parent=1 // pred_region
      _
    $region25: #{tpu_custom_call.1} parent=1 // pred_fallthru
      _
    // Predicated region
    $region26: #{tpu_custom_call.1} parent=1 // pred_check
      _
    $region27: #{tpu_custom_call.1} parent=1 // pred_check_branch
      %37 = sbr.rel (0) target = $region29
    $region28: #{tpu_custom_call.1} parent=1 // pred_region
      %39 = dma.done [#allocation5], 3072
    $region29: #{tpu_custom_call.1} parent=1 // pred_fallthru
      _
    %p41 = scmp.eq.s32.totalorder 0, 0
    // Predicated region
    $region30: #{tpu_custom_call.1} parent=1 // pred_check
      %p42 = pneg %p41
    $region31: #{tpu_custom_call.1} parent=1 // pred_check_branch
      %44 = sbr.rel (%p42) target = $region33
    $region32: #{tpu_custom_call.1} parent=1 // pred_region
      %45 = vst [vmem:[#allocation3] sm:$0xff] 0.0
    $region33: #{tpu_custom_call.1} parent=1 // pred_fallthru
      _
    %v46 = vld [vmem:[%s1] sm:$0xf]
    %v47 = vld [vmem:[%s1 + $0x4] sm:$0xf]
    %v48 = vld [vmem:[%s1 + $0x8] sm:$0xf]
    %v49 = vld [vmem:[%s1 + $0xc] sm:$0xf]
    %v50 = vld [vmem:[%s1 + $0x10] sm:$0xf]
    %v51 = vld [vmem:[%s1 + $0x14] sm:$0xf]
    %v52 = vld [vmem:[%s1 + $0x18] sm:$0xf]
    %v53 = vld [vmem:[%s1 + $0x1c] sm:$0xf]
    %v54 = vld [vmem:[%s2] sm:$0xff]
    %v55 = vld [vmem:[%s2 + $0x8] sm:$0xf]
    %v56 = vld [vmem:[%s2 + $0xc] sm:$0xff]
    %v57 = vld [vmem:[%s2 + $0x14] sm:$0xf]
    %v58 = vld [vmem:[%s2 + $0x18] sm:$0xff]
    %v59 = vld [vmem:[%s2 + $0x20] sm:$0xf]
    %v60 = vld [vmem:[%s2 + $0x24] sm:$0xff]
    %v61 = vld [vmem:[%s2 + $0x2c] sm:$0xf]
    %v70 = vunpack.c.l.b16 %v46
    %v71 = vunpack.c.l.b16 %v47
    %v72 = vunpack.c.l.b16 %v48
    %v73 = vunpack.c.l.b16 %v49
    %v74 = vunpack.c.l.b16 %v50
    %v75 = vunpack.c.l.b16 %v51
    %v76 = vunpack.c.l.b16 %v52
    %v77 = vunpack.c.l.b16 %v53
    %v78 = vpack.c.b16 %v71, %v70
    %v79 = vpack.c.b16 %v73, %v72
    %v80 = vpack.c.b16 %v75, %v74
    %v81 = vpack.c.b16 %v77, %v76
    %v90 = vunpack.c.l.b16 %v54
    %v91 = vunpack.c.h.b16 %v54
    %v92 = vunpack.c.l.b16 %v55
    %v93 = vunpack.c.l.b16 %v56
    %v94 = vunpack.c.h.b16 %v56
    %v95 = vunpack.c.l.b16 %v57
    %v96 = vunpack.c.l.b16 %v58
    %v97 = vunpack.c.h.b16 %v58
    %v98 = vunpack.c.l.b16 %v59
    %v99 = vunpack.c.l.b16 %v60
    %v100 = vunpack.c.h.b16 %v60
    %v101 = vunpack.c.l.b16 %v61
    %v102 = vpack.c.b16 %v93, %v90
    %v103 = vpack.c.b16 %v94, %v91
    %v104 = vpack.c.b16 %v95, %v92
    %v105 = vpack.c.b16 %v99, %v96
    %v106 = vpack.c.b16 %v100, %v97
    %v107 = vpack.c.b16 %v101, %v98
    %vm114 = vcmask 261120
    %v116 = vsel %vm114, %v78, 0
    %v119 = vsel %vm114, %v79, 0
    %v122 = vsel %vm114, %v80, 0
    %v125 = vsel %vm114, %v81, 0
    %127 = vmatpush.bf16.msra.mxu0 0
    %128 = vmatpush.bf16.msra.mxu0 0
    %129 = vmatpush.bf16.msra.mxu0 0
    %130 = vmatpush.bf16.msra.mxu0 0
    %131 = vmatpush.bf16.msra.mxu0 0
    %132 = vmatpush.bf16.msra.mxu0 0
    %133 = vmatpush.bf16.msra.mxu0 %v105
    %134 = vmatpush.bf16.msra.mxu0 %v102
    %135 = vmatmul.bf16.gmra.mxu0 %v116
    %v136 = vpop.f32.mrf.mxu0
    %v137 = vadd.f32 0.0, %v136
    %v138 = vpop.f32.mrf.mxu0
    %v139 = vadd.f32 0.0, %v138
    %140 = vmatmul.bf16.gmra.mxu0 %v119
    %v141 = vpop.f32.mrf.mxu0
    %v142 = vadd.f32 0.0, %v141
    %v143 = vpop.f32.mrf.mxu0
    %v144 = vadd.f32 0.0, %v143
    %145 = vmatmul.bf16.gmra.mxu0 %v122
    %v146 = vpop.f32.mrf.mxu0
    %v147 = vadd.f32 0.0, %v146
    %v148 = vpop.f32.mrf.mxu0
    %v149 = vadd.f32 0.0, %v148
    %150 = vmatmul.bf16.gmra.mxu0 %v125
    %v151 = vpop.f32.mrf.mxu0
    %v152 = vadd.f32 0.0, %v151
    %v153 = vpop.f32.mrf.mxu0
    %v154 = vadd.f32 0.0, %v153
    %155 = vdwg.mxu0
    %156 = vmatpush.bf16.msra.mxu0 0
    %157 = vmatpush.bf16.msra.mxu0 0
    %158 = vmatpush.bf16.msra.mxu0 0
    %159 = vmatpush.bf16.msra.mxu0 0
    %160 = vmatpush.bf16.msra.mxu0 0
    %161 = vmatpush.bf16.msra.mxu0 0
    %162 = vmatpush.bf16.msra.mxu0 %v106
    %163 = vmatpush.bf16.msra.mxu0 %v103
    %164 = vmatmul.bf16.gmra.mxu0 %v116
    %v165 = vpop.f32.mrf.mxu0
    %v166 = vadd.f32 0.0, %v165
    %v167 = vpop.f32.mrf.mxu0
    %v168 = vadd.f32 0.0, %v167
    %169 = vmatmul.bf16.gmra.mxu0 %v119
    %v170 = vpop.f32.mrf.mxu0
    %v171 = vadd.f32 0.0, %v170
    %v172 = vpop.f32.mrf.mxu0
    %v173 = vadd.f32 0.0, %v172
    %174 = vmatmul.bf16.gmra.mxu0 %v122
    %v175 = vpop.f32.mrf.mxu0
    %v176 = vadd.f32 0.0, %v175
    %v177 = vpop.f32.mrf.mxu0
    %v178 = vadd.f32 0.0, %v177
    %179 = vmatmul.bf16.gmra.mxu0 %v125
    %v180 = vpop.f32.mrf.mxu0
    %v181 = vadd.f32 0.0, %v180
    %v182 = vpop.f32.mrf.mxu0
    %v183 = vadd.f32 0.0, %v182
    %184 = vdwg.mxu0
    %185 = vmatpush.bf16.msra.mxu0 0
    %186 = vmatpush.bf16.msra.mxu0 0
    %187 = vmatpush.bf16.msra.mxu0 0
    %188 = vmatpush.bf16.msra.mxu0 0
    %189 = vmatpush.bf16.msra.mxu0 0
    %190 = vmatpush.bf16.msra.mxu0 0
    %191 = vmatpush.bf16.msra.mxu0 %v107
    %192 = vmatpush.bf16.msra.mxu0 %v104
    %193 = vmatmul.bf16.gmra.mxu0 %v116
    %v194 = vpop.f32.mrf.mxu0
    %v195 = vadd.f32 0.0, %v194
    %v196 = vpop.f32.mrf.mxu0
    %v197 = vadd.f32 0.0, %v196
    %198 = vmatmul.bf16.gmra.mxu0 %v119
    %v199 = vpop.f32.mrf.mxu0
    %v200 = vadd.f32 0.0, %v199
    %v201 = vpop.f32.mrf.mxu0
    %v202 = vadd.f32 0.0, %v201
    %203 = vmatmul.bf16.gmra.mxu0 %v122
    %v204 = vpop.f32.mrf.mxu0
    %v205 = vadd.f32 0.0, %v204
    %v206 = vpop.f32.mrf.mxu0
    %v207 = vadd.f32 0.0, %v206
    %208 = vmatmul.bf16.gmra.mxu0 %v125
    %v209 = vpop.f32.mrf.mxu0
    %v210 = vadd.f32 0.0, %v209
    %v211 = vpop.f32.mrf.mxu0
    %v212 = vadd.f32 0.0, %v211
    %213 = vdwg.mxu0
    %214 = vst [vmem:[#allocation2] sm:$0xff] %v137
    %215 = vst [vmem:[#allocation2 + $0x8] sm:$0xff] %v166
    %216 = vst [vmem:[#allocation2 + $0x10] sm:$0xff] %v195
    %217 = vst [vmem:[#allocation2 + $0x18] sm:$0xff] %v139
    %218 = vst [vmem:[#allocation2 + $0x20] sm:$0xff] %v168
    %219 = vst [vmem:[#allocation2 + $0x28] sm:$0xff] %v197
    %220 = vst [vmem:[#allocation2 + $0x30] sm:$0xff] %v142
    %221 = vst [vmem:[#allocation2 + $0x38] sm:$0xff] %v171
    %222 = vst [vmem:[#allocation2 + $0x40] sm:$0xff] %v200
    %223 = vst [vmem:[#allocation2 + $0x48] sm:$0xff] %v144
    %224 = vst [vmem:[#allocation2 + $0x50] sm:$0xff] %v173
    %225 = vst [vmem:[#allocation2 + $0x58] sm:$0xff] %v202
    %226 = vst [vmem:[#allocation2 + $0x60] sm:$0xff] %v147
    %227 = vst [vmem:[#allocation2 + $0x68] sm:$0xff] %v176
    %228 = vst [vmem:[#allocation2 + $0x70] sm:$0xff] %v205
    %229 = vst [vmem:[#allocation2 + $0x78] sm:$0xff] %v149
    %230 = vst [vmem:[#allocation2 + $0x80] sm:$0xff] %v178
    %231 = vst [vmem:[#allocation2 + $0x88] sm:$0xff] %v207
    %232 = vst [vmem:[#allocation2 + $0x90] sm:$0xff] %v152
    %233 = vst [vmem:[#allocation2 + $0x98] sm:$0xff] %v181
    %234 = vst [vmem:[#allocation2 + $0xa0] sm:$0xff] %v210
    %235 = vst [vmem:[#allocation2 + $0xa8] sm:$0xff] %v154
    %236 = vst [vmem:[#allocation2 + $0xb0] sm:$0xff] %v183
    %237 = vst [vmem:[#allocation2 + $0xb8] sm:$0xff] %v212
    %v238 = vld [vmem:[%s0] sm:$0xff]
    %v239 = vld [vmem:[%s4] sm:$0x7]
    %v240 = vld [vmem:[%s5] sm:$0x1]
    %v241 = vld [vmem:[#allocation4] sm:$0xff]
    %v242 = vld [vmem:[#allocation4 + $0x8] sm:$0xf]
    %v243 = vld [vmem:[#allocation4 + $0xc] sm:$0xff]
    %v244 = vld [vmem:[#allocation4 + $0x14] sm:$0xf]
    %v245 = vld [vmem:[#allocation4 + $0x18] sm:$0xff]
    %v246 = vld [vmem:[#allocation4 + $0x20] sm:$0xf]
    %v247 = vld [vmem:[#allocation4 + $0x24] sm:$0xff]
    %v248 = vld [vmem:[#allocation4 + $0x2c] sm:$0xf]
    %v249 = vld [vmem:[#allocation4 + $0x30] sm:$0xff]
    %v250 = vld [vmem:[#allocation4 + $0x38] sm:$0xf]
    %v251 = vld [vmem:[#allocation4 + $0x3c] sm:$0xff]
    %v252 = vld [vmem:[#allocation4 + $0x44] sm:$0xf]
    %v253 = vld [vmem:[#allocation4 + $0x48] sm:$0xff]
    %v254 = vld [vmem:[#allocation4 + $0x50] sm:$0xf]
    %v255 = vld [vmem:[#allocation4 + $0x54] sm:$0xff]
    %v256 = vld [vmem:[#allocation4 + $0x5c] sm:$0xf]
    %v257 = vld [vmem:[#allocation4 + $0x60] sm:$0xff]
    %v258 = vld [vmem:[#allocation4 + $0x68] sm:$0xf]
    %v259 = vld [vmem:[#allocation4 + $0x6c] sm:$0xff]
    %v260 = vld [vmem:[#allocation4 + $0x74] sm:$0xf]
    %v261 = vld [vmem:[#allocation4 + $0x78] sm:$0xff]
    %v262 = vld [vmem:[#allocation4 + $0x80] sm:$0xf]
    %v263 = vld [vmem:[#allocation4 + $0x84] sm:$0xff]
    %v264 = vld [vmem:[#allocation4 + $0x8c] sm:$0xf]
    %v265 = vld [vmem:[#allocation4 + $0x90] sm:$0xff]
    %v266 = vld [vmem:[#allocation4 + $0x98] sm:$0xf]
    %v267 = vld [vmem:[#allocation4 + $0x9c] sm:$0xff]
    %v268 = vld [vmem:[#allocation4 + $0xa4] sm:$0xf]
    %v269 = vld [vmem:[#allocation4 + $0xa8] sm:$0xff]
    %v270 = vld [vmem:[#allocation4 + $0xb0] sm:$0xf]
    %v271 = vld [vmem:[#allocation4 + $0xb4] sm:$0xff]
    %v272 = vld [vmem:[#allocation4 + $0xbc] sm:$0xf]
    %s273 = smul.u32 0, 8
    %v274 = vld [vmem:[#allocation3] sm:$0xff]
    %s275 = smul.u32 0, 3
    %s276 = smul.addr %s275, 8
    %s277 = scalar_lea.vmem [#allocation2], %s276
    %v278 = vld [vmem:[%s277] sm:$0xff]
    %v279 = vld [vmem:[%s277 + $0x8] sm:$0xff]
    %v280 = vld [vmem:[%s277 + $0x10] sm:$0xff]
    %v281 = vpack.c.bf16 %v274, %v274
    %v283 = vperm.slane %v239, 0
    %v284 = vperm.slane %v239, 1
    %v285 = vperm.slane %v239, 2
    %v321 = vunpack.c.l.b16 %v241
    %v322 = vunpack.c.h.b16 %v241
    %v323 = vunpack.c.l.b16 %v242
    %v324 = vunpack.c.l.b16 %v243
    %v325 = vunpack.c.h.b16 %v243
    %v326 = vunpack.c.l.b16 %v244
    %v327 = vunpack.c.l.b16 %v245
    %v328 = vunpack.c.h.b16 %v245
    %v329 = vunpack.c.l.b16 %v246
    %v330 = vunpack.c.l.b16 %v247
    %v331 = vunpack.c.h.b16 %v247
    %v332 = vunpack.c.l.b16 %v248
    %v333 = vunpack.c.l.b16 %v249
    %v334 = vunpack.c.h.b16 %v249
    %v335 = vunpack.c.l.b16 %v250
    %v336 = vunpack.c.l.b16 %v251
    %v337 = vunpack.c.h.b16 %v251
    %v338 = vunpack.c.l.b16 %v252
    %v339 = vunpack.c.l.b16 %v253
    %v340 = vunpack.c.h.b16 %v253
    %v341 = vunpack.c.l.b16 %v254
    %v342 = vunpack.c.l.b16 %v255
    %v343 = vunpack.c.h.b16 %v255
    %v344 = vunpack.c.l.b16 %v256
    %v345 = vunpack.c.l.b16 %v257
    %v346 = vunpack.c.h.b16 %v257
    %v347 = vunpack.c.l.b16 %v258
    %v348 = vunpack.c.l.b16 %v259
    %v349 = vunpack.c.h.b16 %v259
    %v350 = vunpack.c.l.b16 %v260
    %v351 = vunpack.c.l.b16 %v261
    %v352 = vunpack.c.h.b16 %v261
    %v353 = vunpack.c.l.b16 %v262
    %v354 = vunpack.c.l.b16 %v263
    %v355 = vunpack.c.h.b16 %v263
    %v356 = vunpack.c.l.b16 %v264
    %v357 = vunpack.c.l.b16 %v265
    %v358 = vunpack.c.h.b16 %v265
    %v359 = vunpack.c.l.b16 %v266
    %v360 = vunpack.c.l.b16 %v267
    %v361 = vunpack.c.h.b16 %v267
    %v362 = vunpack.c.l.b16 %v268
    %v363 = vunpack.c.l.b16 %v269
    %v364 = vunpack.c.h.b16 %v269
    %v365 = vunpack.c.l.b16 %v270
    %v366 = vunpack.c.l.b16 %v271
    %v367 = vunpack.c.h.b16 %v271
    %v368 = vunpack.c.l.b16 %v272
    %v369 = vpack.c.b16 %v324, %v321
    %v370 = vpack.c.b16 %v325, %v322
    %v371 = vpack.c.b16 %v326, %v323
    %v372 = vpack.c.b16 %v330, %v327
    %v373 = vpack.c.b16 %v331, %v328
    %v374 = vpack.c.b16 %v332, %v329
    %v375 = vpack.c.b16 %v336, %v333
    %v376 = vpack.c.b16 %v337, %v334
    %v377 = vpack.c.b16 %v338, %v335
    %v378 = vpack.c.b16 %v342, %v339
    %v379 = vpack.c.b16 %v343, %v340
    %v380 = vpack.c.b16 %v344, %v341
    %v381 = vpack.c.b16 %v348, %v345
    %v382 = vpack.c.b16 %v349, %v346
    %v383 = vpack.c.b16 %v350, %v347
    %v384 = vpack.c.b16 %v354, %v351
    %v385 = vpack.c.b16 %v355, %v352
    %v386 = vpack.c.b16 %v356, %v353
    %v387 = vpack.c.b16 %v360, %v357
    %v388 = vpack.c.b16 %v361, %v358
    %v389 = vpack.c.b16 %v362, %v359
    %v390 = vpack.c.b16 %v366, %v363
    %v391 = vpack.c.b16 %v367, %v364
    %v392 = vpack.c.b16 %v368, %v365
    %417 = vmatpush.bf16.msra.mxu0 %v390
    %418 = vmatpush.bf16.msra.mxu0 %v387
    %419 = vmatpush.bf16.msra.mxu0 %v384
    %420 = vmatpush.bf16.msra.mxu0 %v381
    %421 = vmatpush.bf16.msra.mxu0 %v378
    %422 = vmatpush.bf16.msra.mxu0 %v375
    %423 = vmatpush.bf16.msra.mxu0 %v372
    %424 = vmatpush.bf16.msra.mxu0 %v369
    %425 = vmatmul.bf16.gmra.mxu0 %v281
    %v426 = vpop.f32.mrf.mxu0
    %v427 = vadd.f32 %v283, %v426
    %v428 = vpop.f32.mrf.mxu0
    %429 = vdwg.mxu0
    %430 = vmatpush.bf16.msra.mxu0 %v391
    %431 = vmatpush.bf16.msra.mxu0 %v388
    %432 = vmatpush.bf16.msra.mxu0 %v385
    %433 = vmatpush.bf16.msra.mxu0 %v382
    %434 = vmatpush.bf16.msra.mxu0 %v379
    %435 = vmatpush.bf16.msra.mxu0 %v376
    %436 = vmatpush.bf16.msra.mxu0 %v373
    %437 = vmatpush.bf16.msra.mxu0 %v370
    %438 = vmatmul.bf16.gmra.mxu0 %v281
    %v439 = vpop.f32.mrf.mxu0
    %v440 = vadd.f32 %v284, %v439
    %v441 = vpop.f32.mrf.mxu0
    %442 = vdwg.mxu0
    %443 = vmatpush.bf16.msra.mxu0 %v392
    %444 = vmatpush.bf16.msra.mxu0 %v389
    %445 = vmatpush.bf16.msra.mxu0 %v386
    %446 = vmatpush.bf16.msra.mxu0 %v383
    %447 = vmatpush.bf16.msra.mxu0 %v380
    %448 = vmatpush.bf16.msra.mxu0 %v377
    %449 = vmatpush.bf16.msra.mxu0 %v374
    %450 = vmatpush.bf16.msra.mxu0 %v371
    %451 = vmatmul.bf16.gmra.mxu0 %v281
    %v452 = vpop.f32.mrf.mxu0
    %v453 = vadd.f32 %v285, %v452
    %v454 = vpop.f32.mrf.mxu0
    %455 = vdwg.mxu0
    %v456 = vadd.f32 %v278, %v427
    %v457 = vmul.f32 %v456, 0.5
    %v458 = vtanh.pop %v457
    %v459 = vadd.f32 %v458, 1.0
    %v460 = vmul.f32 %v459, 0.5
    %v461 = vadd.f32 %v279, %v440
    %v462 = vmul.f32 %v461, 0.5
    %v463 = vtanh.pop %v462
    %v464 = vadd.f32 %v463, 1.0
    %v465 = vmul.f32 %v464, 0.5
    %v467 = vperm.slane %v240, 0
    %v469 = vadd.f32 %v280, %v467
    %v470 = vmul.f32 %v460, %v453
    %v471 = vadd.f32 %v469, %v470
    %v472 = vtanh.pop %v471
    %v473 = vsub.f32 1.0, %v465
    %v474 = vmul.f32 %v473, %v472
    %v475 = vmul.f32 %v465, %v274
    %v476 = vadd.f32 %v474, %v475
    %v477 = vstv %s273
    %vm478 = vcmp.lt.s32.totalorder %v477, %v238
    %v479 = vsel %vm478, 1, 0
    %480 = vset.pattern.permute.xlu0 0
    %481 = vperm.xlu0 %480, %v479
    %v482 = vpop.permute.xlu0 %481
    %vm483 = vcmp.eq.s32.totalorder %v482, 1
    %v484 = vsel %vm483, %v476, %v274
    %s485 = smul.u32 1, 3
    %s486 = smul.addr %s485, 8
    %s487 = scalar_lea.vmem [#allocation2], %s486
    %v488 = vld [vmem:[%s487] sm:$0xff]
    %v489 = vld [vmem:[%s487 + $0x8] sm:$0xff]
    %v490 = vld [vmem:[%s487 + $0x10] sm:$0xff]
    %v491 = vpack.c.bf16 %v484, %v484
    %492 = vmatpush.bf16.msra.mxu0 %v390
    %493 = vmatpush.bf16.msra.mxu0 %v387
    %494 = vmatpush.bf16.msra.mxu0 %v384
    %495 = vmatpush.bf16.msra.mxu0 %v381
    %496 = vmatpush.bf16.msra.mxu0 %v378
    %497 = vmatpush.bf16.msra.mxu0 %v375
    %498 = vmatpush.bf16.msra.mxu0 %v372
    %499 = vmatpush.bf16.msra.mxu0 %v369
    %500 = vmatmul.bf16.gmra.mxu0 %v491
    %v501 = vpop.f32.mrf.mxu0
    %v502 = vadd.f32 %v283, %v501
    %v503 = vpop.f32.mrf.mxu0
    %504 = vdwg.mxu0
    %505 = vmatpush.bf16.msra.mxu0 %v391
    %506 = vmatpush.bf16.msra.mxu0 %v388
    %507 = vmatpush.bf16.msra.mxu0 %v385
    %508 = vmatpush.bf16.msra.mxu0 %v382
    %509 = vmatpush.bf16.msra.mxu0 %v379
    %510 = vmatpush.bf16.msra.mxu0 %v376
    %511 = vmatpush.bf16.msra.mxu0 %v373
    %512 = vmatpush.bf16.msra.mxu0 %v370
    %513 = vmatmul.bf16.gmra.mxu0 %v491
    %v514 = vpop.f32.mrf.mxu0
    %v515 = vadd.f32 %v284, %v514
    %v516 = vpop.f32.mrf.mxu0
    %517 = vdwg.mxu0
    %518 = vmatpush.bf16.msra.mxu0 %v392
    %519 = vmatpush.bf16.msra.mxu0 %v389
    %520 = vmatpush.bf16.msra.mxu0 %v386
    %521 = vmatpush.bf16.msra.mxu0 %v383
    %522 = vmatpush.bf16.msra.mxu0 %v380
    %523 = vmatpush.bf16.msra.mxu0 %v377
    %524 = vmatpush.bf16.msra.mxu0 %v374
    %525 = vmatpush.bf16.msra.mxu0 %v371
    %526 = vmatmul.bf16.gmra.mxu0 %v491
    %v527 = vpop.f32.mrf.mxu0
    %v528 = vadd.f32 %v285, %v527
    %v529 = vpop.f32.mrf.mxu0
    %530 = vdwg.mxu0
    %v531 = vadd.f32 %v488, %v502
    %v532 = vmul.f32 %v531, 0.5
    %v533 = vtanh.pop %v532
    %v534 = vadd.f32 %v533, 1.0
    %v535 = vmul.f32 %v534, 0.5
    %v536 = vadd.f32 %v489, %v515
    %v537 = vmul.f32 %v536, 0.5
    %v538 = vtanh.pop %v537
    %v539 = vadd.f32 %v538, 1.0
    %v540 = vmul.f32 %v539, 0.5
    %v541 = vadd.f32 %v490, %v467
    %v542 = vmul.f32 %v535, %v528
    %v543 = vadd.f32 %v541, %v542
    %v544 = vtanh.pop %v543
    %v545 = vsub.f32 1.0, %v540
    %v546 = vmul.f32 %v545, %v544
    %v547 = vmul.f32 %v540, %v484
    %v548 = vadd.f32 %v546, %v547
    %s549 = sadd.s32 %s273, 1
    %v550 = vstv %s549
    %vm551 = vcmp.lt.s32.totalorder %v550, %v238
    %v552 = vsel %vm551, 1, 0
    %553 = vset.pattern.permute.xlu0 0
    %554 = vperm.xlu0 %553, %v552
    %v555 = vpop.permute.xlu0 %554
    %vm556 = vcmp.eq.s32.totalorder %v555, 1
    %v557 = vsel %vm556, %v548, %v484
    %s558 = smul.u32 2, 3
    %s559 = smul.addr %s558, 8
    %s560 = scalar_lea.vmem [#allocation2], %s559
    %v561 = vld [vmem:[%s560] sm:$0xff]
    %v562 = vld [vmem:[%s560 + $0x8] sm:$0xff]
    %v563 = vld [vmem:[%s560 + $0x10] sm:$0xff]
    %v564 = vpack.c.bf16 %v557, %v557
    %565 = vmatpush.bf16.msra.mxu0 %v390
    %566 = vmatpush.bf16.msra.mxu0 %v387
    %567 = vmatpush.bf16.msra.mxu0 %v384
    %568 = vmatpush.bf16.msra.mxu0 %v381
    %569 = vmatpush.bf16.msra.mxu0 %v378
    %570 = vmatpush.bf16.msra.mxu0 %v375
    %571 = vmatpush.bf16.msra.mxu0 %v372
    %572 = vmatpush.bf16.msra.mxu0 %v369
    %573 = vmatmul.bf16.gmra.mxu0 %v564
    %v574 = vpop.f32.mrf.mxu0
    %v575 = vadd.f32 %v283, %v574
    %v576 = vpop.f32.mrf.mxu0
    %577 = vdwg.mxu0
    %578 = vmatpush.bf16.msra.mxu0 %v391
    %579 = vmatpush.bf16.msra.mxu0 %v388
    %580 = vmatpush.bf16.msra.mxu0 %v385
    %581 = vmatpush.bf16.msra.mxu0 %v382
    %582 = vmatpush.bf16.msra.mxu0 %v379
    %583 = vmatpush.bf16.msra.mxu0 %v376
    %584 = vmatpush.bf16.msra.mxu0 %v373
    %585 = vmatpush.bf16.msra.mxu0 %v370
    %586 = vmatmul.bf16.gmra.mxu0 %v564
    %v587 = vpop.f32.mrf.mxu0
    %v588 = vadd.f32 %v284, %v587
    %v589 = vpop.f32.mrf.mxu0
    %590 = vdwg.mxu0
    %591 = vmatpush.bf16.msra.mxu0 %v392
    %592 = vmatpush.bf16.msra.mxu0 %v389
    %593 = vmatpush.bf16.msra.mxu0 %v386
    %594 = vmatpush.bf16.msra.mxu0 %v383
    %595 = vmatpush.bf16.msra.mxu0 %v380
    %596 = vmatpush.bf16.msra.mxu0 %v377
    %597 = vmatpush.bf16.msra.mxu0 %v374
    %598 = vmatpush.bf16.msra.mxu0 %v371
    %599 = vmatmul.bf16.gmra.mxu0 %v564
    %v600 = vpop.f32.mrf.mxu0
    %v601 = vadd.f32 %v285, %v600
    %v602 = vpop.f32.mrf.mxu0
    %603 = vdwg.mxu0
    %v604 = vadd.f32 %v561, %v575
    %v605 = vmul.f32 %v604, 0.5
    %v606 = vtanh.pop %v605
    %v607 = vadd.f32 %v606, 1.0
    %v608 = vmul.f32 %v607, 0.5
    %v609 = vadd.f32 %v562, %v588
    %v610 = vmul.f32 %v609, 0.5
    %v611 = vtanh.pop %v610
    %v612 = vadd.f32 %v611, 1.0
    %v613 = vmul.f32 %v612, 0.5
    %v614 = vadd.f32 %v563, %v467
    %v615 = vmul.f32 %v608, %v601
    %v616 = vadd.f32 %v614, %v615
    %v617 = vtanh.pop %v616
    %v618 = vsub.f32 1.0, %v613
    %v619 = vmul.f32 %v618, %v617
    %v620 = vmul.f32 %v613, %v557
    %v621 = vadd.f32 %v619, %v620
    %s622 = sadd.s32 %s273, 2
    %v623 = vstv %s622
    %vm624 = vcmp.lt.s32.totalorder %v623, %v238
    %v625 = vsel %vm624, 1, 0
    %626 = vset.pattern.permute.xlu0 0
    %627 = vperm.xlu0 %626, %v625
    %v628 = vpop.permute.xlu0 %627
    %vm629 = vcmp.eq.s32.totalorder %v628, 1
    %v630 = vsel %vm629, %v621, %v557
    %s631 = smul.u32 3, 3
    %s632 = smul.addr %s631, 8
    %s633 = scalar_lea.vmem [#allocation2], %s632
    %v634 = vld [vmem:[%s633] sm:$0xff]
    %v635 = vld [vmem:[%s633 + $0x8] sm:$0xff]
    %v636 = vld [vmem:[%s633 + $0x10] sm:$0xff]
    %v637 = vpack.c.bf16 %v630, %v630
    %638 = vmatpush.bf16.msra.mxu0 %v390
    %639 = vmatpush.bf16.msra.mxu0 %v387
    %640 = vmatpush.bf16.msra.mxu0 %v384
    %641 = vmatpush.bf16.msra.mxu0 %v381
    %642 = vmatpush.bf16.msra.mxu0 %v378
    %643 = vmatpush.bf16.msra.mxu0 %v375
    %644 = vmatpush.bf16.msra.mxu0 %v372
    %645 = vmatpush.bf16.msra.mxu0 %v369
    %646 = vmatmul.bf16.gmra.mxu0 %v637
    %v647 = vpop.f32.mrf.mxu0
    %v648 = vadd.f32 %v283, %v647
    %v649 = vpop.f32.mrf.mxu0
    %650 = vdwg.mxu0
    %651 = vmatpush.bf16.msra.mxu0 %v391
    %652 = vmatpush.bf16.msra.mxu0 %v388
    %653 = vmatpush.bf16.msra.mxu0 %v385
    %654 = vmatpush.bf16.msra.mxu0 %v382
    %655 = vmatpush.bf16.msra.mxu0 %v379
    %656 = vmatpush.bf16.msra.mxu0 %v376
    %657 = vmatpush.bf16.msra.mxu0 %v373
    %658 = vmatpush.bf16.msra.mxu0 %v370
    %659 = vmatmul.bf16.gmra.mxu0 %v637
    %v660 = vpop.f32.mrf.mxu0
    %v661 = vadd.f32 %v284, %v660
    %v662 = vpop.f32.mrf.mxu0
    %663 = vdwg.mxu0
    %664 = vmatpush.bf16.msra.mxu0 %v392
    %665 = vmatpush.bf16.msra.mxu0 %v389
    %666 = vmatpush.bf16.msra.mxu0 %v386
    %667 = vmatpush.bf16.msra.mxu0 %v383
    %668 = vmatpush.bf16.msra.mxu0 %v380
    %669 = vmatpush.bf16.msra.mxu0 %v377
    %670 = vmatpush.bf16.msra.mxu0 %v374
    %671 = vmatpush.bf16.msra.mxu0 %v371
    %672 = vmatmul.bf16.gmra.mxu0 %v637
    %v673 = vpop.f32.mrf.mxu0
    %v674 = vadd.f32 %v285, %v673
    %v675 = vpop.f32.mrf.mxu0
    %676 = vdwg.mxu0
    %v677 = vadd.f32 %v634, %v648
    %v678 = vmul.f32 %v677, 0.5
    %v679 = vtanh.pop %v678
    %v680 = vadd.f32 %v679, 1.0
    %v681 = vmul.f32 %v680, 0.5
    %v682 = vadd.f32 %v635, %v661
    %v683 = vmul.f32 %v682, 0.5
    %v684 = vtanh.pop %v683
    %v685 = vadd.f32 %v684, 1.0
    %v686 = vmul.f32 %v685, 0.5
    %v687 = vadd.f32 %v636, %v467
    %v688 = vmul.f32 %v681, %v674
    %v689 = vadd.f32 %v687, %v688
    %v690 = vtanh.pop %v689
    %v691 = vsub.f32 1.0, %v686
    %v692 = vmul.f32 %v691, %v690
    %v693 = vmul.f32 %v686, %v630
    %v694 = vadd.f32 %v692, %v693
    %s695 = sadd.s32 %s273, 3
    %v696 = vstv %s695
    %vm697 = vcmp.lt.s32.totalorder %v696, %v238
    %v698 = vsel %vm697, 1, 0
    %699 = vset.pattern.permute.xlu0 0
    %700 = vperm.xlu0 %699, %v698
    %v701 = vpop.permute.xlu0 %700
    %vm702 = vcmp.eq.s32.totalorder %v701, 1
    %v703 = vsel %vm702, %v694, %v630
    %s704 = smul.u32 4, 3
    %s705 = smul.addr %s704, 8
    %s706 = scalar_lea.vmem [#allocation2], %s705
    %v707 = vld [vmem:[%s706] sm:$0xff]
    %v708 = vld [vmem:[%s706 + $0x8] sm:$0xff]
    %v709 = vld [vmem:[%s706 + $0x10] sm:$0xff]
    %v710 = vpack.c.bf16 %v703, %v703
    %711 = vmatpush.bf16.msra.mxu0 %v390
    %712 = vmatpush.bf16.msra.mxu0 %v387
    %713 = vmatpush.bf16.msra.mxu0 %v384
    %714 = vmatpush.bf16.msra.mxu0 %v381
    %715 = vmatpush.bf16.msra.mxu0 %v378
    %716 = vmatpush.bf16.msra.mxu0 %v375
    %717 = vmatpush.bf16.msra.mxu0 %v372
    %718 = vmatpush.bf16.msra.mxu0 %v369
    %719 = vmatmul.bf16.gmra.mxu0 %v710
    %v720 = vpop.f32.mrf.mxu0
    %v721 = vadd.f32 %v283, %v720
    %v722 = vpop.f32.mrf.mxu0
    %723 = vdwg.mxu0
    %724 = vmatpush.bf16.msra.mxu0 %v391
    %725 = vmatpush.bf16.msra.mxu0 %v388
    %726 = vmatpush.bf16.msra.mxu0 %v385
    %727 = vmatpush.bf16.msra.mxu0 %v382
    %728 = vmatpush.bf16.msra.mxu0 %v379
    %729 = vmatpush.bf16.msra.mxu0 %v376
    %730 = vmatpush.bf16.msra.mxu0 %v373
    %731 = vmatpush.bf16.msra.mxu0 %v370
    %732 = vmatmul.bf16.gmra.mxu0 %v710
    %v733 = vpop.f32.mrf.mxu0
    %v734 = vadd.f32 %v284, %v733
    %v735 = vpop.f32.mrf.mxu0
    %736 = vdwg.mxu0
    %737 = vmatpush.bf16.msra.mxu0 %v392
    %738 = vmatpush.bf16.msra.mxu0 %v389
    %739 = vmatpush.bf16.msra.mxu0 %v386
    %740 = vmatpush.bf16.msra.mxu0 %v383
    %741 = vmatpush.bf16.msra.mxu0 %v380
    %742 = vmatpush.bf16.msra.mxu0 %v377
    %743 = vmatpush.bf16.msra.mxu0 %v374
    %744 = vmatpush.bf16.msra.mxu0 %v371
    %745 = vmatmul.bf16.gmra.mxu0 %v710
    %v746 = vpop.f32.mrf.mxu0
    %v747 = vadd.f32 %v285, %v746
    %v748 = vpop.f32.mrf.mxu0
    %749 = vdwg.mxu0
    %v750 = vadd.f32 %v707, %v721
    %v751 = vmul.f32 %v750, 0.5
    %v752 = vtanh.pop %v751
    %v753 = vadd.f32 %v752, 1.0
    %v754 = vmul.f32 %v753, 0.5
    %v755 = vadd.f32 %v708, %v734
    %v756 = vmul.f32 %v755, 0.5
    %v757 = vtanh.pop %v756
    %v758 = vadd.f32 %v757, 1.0
    %v759 = vmul.f32 %v758, 0.5
    %v760 = vadd.f32 %v709, %v467
    %v761 = vmul.f32 %v754, %v747
    %v762 = vadd.f32 %v760, %v761
    %v763 = vtanh.pop %v762
    %v764 = vsub.f32 1.0, %v759
    %v765 = vmul.f32 %v764, %v763
    %v766 = vmul.f32 %v759, %v703
    %v767 = vadd.f32 %v765, %v766
    %s768 = sadd.s32 %s273, 4
    %v769 = vstv %s768
    %vm770 = vcmp.lt.s32.totalorder %v769, %v238
    %v771 = vsel %vm770, 1, 0
    %772 = vset.pattern.permute.xlu0 0
    %773 = vperm.xlu0 %772, %v771
    %v774 = vpop.permute.xlu0 %773
    %vm775 = vcmp.eq.s32.totalorder %v774, 1
    %v776 = vsel %vm775, %v767, %v703
    %s777 = smul.u32 5, 3
    %s778 = smul.addr %s777, 8
    %s779 = scalar_lea.vmem [#allocation2], %s778
    %v780 = vld [vmem:[%s779] sm:$0xff]
    %v781 = vld [vmem:[%s779 + $0x8] sm:$0xff]
    %v782 = vld [vmem:[%s779 + $0x10] sm:$0xff]
    %v783 = vpack.c.bf16 %v776, %v776
    %784 = vmatpush.bf16.msra.mxu0 %v390
    %785 = vmatpush.bf16.msra.mxu0 %v387
    %786 = vmatpush.bf16.msra.mxu0 %v384
    %787 = vmatpush.bf16.msra.mxu0 %v381
    %788 = vmatpush.bf16.msra.mxu0 %v378
    %789 = vmatpush.bf16.msra.mxu0 %v375
    %790 = vmatpush.bf16.msra.mxu0 %v372
    %791 = vmatpush.bf16.msra.mxu0 %v369
    %792 = vmatmul.bf16.gmra.mxu0 %v783
    %v793 = vpop.f32.mrf.mxu0
    %v794 = vadd.f32 %v283, %v793
    %v795 = vpop.f32.mrf.mxu0
    %796 = vdwg.mxu0
    %797 = vmatpush.bf16.msra.mxu0 %v391
    %798 = vmatpush.bf16.msra.mxu0 %v388
    %799 = vmatpush.bf16.msra.mxu0 %v385
    %800 = vmatpush.bf16.msra.mxu0 %v382
    %801 = vmatpush.bf16.msra.mxu0 %v379
    %802 = vmatpush.bf16.msra.mxu0 %v376
    %803 = vmatpush.bf16.msra.mxu0 %v373
    %804 = vmatpush.bf16.msra.mxu0 %v370
    %805 = vmatmul.bf16.gmra.mxu0 %v783
    %v806 = vpop.f32.mrf.mxu0
    %v807 = vadd.f32 %v284, %v806
    %v808 = vpop.f32.mrf.mxu0
    %809 = vdwg.mxu0
    %810 = vmatpush.bf16.msra.mxu0 %v392
    %811 = vmatpush.bf16.msra.mxu0 %v389
    %812 = vmatpush.bf16.msra.mxu0 %v386
    %813 = vmatpush.bf16.msra.mxu0 %v383
    %814 = vmatpush.bf16.msra.mxu0 %v380
    %815 = vmatpush.bf16.msra.mxu0 %v377
    %816 = vmatpush.bf16.msra.mxu0 %v374
    %817 = vmatpush.bf16.msra.mxu0 %v371
    %818 = vmatmul.bf16.gmra.mxu0 %v783
    %v819 = vpop.f32.mrf.mxu0
    %v820 = vadd.f32 %v285, %v819
    %v821 = vpop.f32.mrf.mxu0
    %822 = vdwg.mxu0
    %v823 = vadd.f32 %v780, %v794
    %v824 = vmul.f32 %v823, 0.5
    %v825 = vtanh.pop %v824
    %v826 = vadd.f32 %v825, 1.0
    %v827 = vmul.f32 %v826, 0.5
    %v828 = vadd.f32 %v781, %v807
    %v829 = vmul.f32 %v828, 0.5
    %v830 = vtanh.pop %v829
    %v831 = vadd.f32 %v830, 1.0
    %v832 = vmul.f32 %v831, 0.5
    %v833 = vadd.f32 %v782, %v467
    %v834 = vmul.f32 %v827, %v820
    %v835 = vadd.f32 %v833, %v834
    %v836 = vtanh.pop %v835
    %v837 = vsub.f32 1.0, %v832
    %v838 = vmul.f32 %v837, %v836
    %v839 = vmul.f32 %v832, %v776
    %v840 = vadd.f32 %v838, %v839
    %s841 = sadd.s32 %s273, 5
    %v842 = vstv %s841
    %vm843 = vcmp.lt.s32.totalorder %v842, %v238
    %v844 = vsel %vm843, 1, 0
    %845 = vset.pattern.permute.xlu0 0
    %846 = vperm.xlu0 %845, %v844
    %v847 = vpop.permute.xlu0 %846
    %vm848 = vcmp.eq.s32.totalorder %v847, 1
    %v849 = vsel %vm848, %v840, %v776
    %s850 = smul.u32 6, 3
    %s851 = smul.addr %s850, 8
    %s852 = scalar_lea.vmem [#allocation2], %s851
    %v853 = vld [vmem:[%s852] sm:$0xff]
    %v854 = vld [vmem:[%s852 + $0x8] sm:$0xff]
    %v855 = vld [vmem:[%s852 + $0x10] sm:$0xff]
    %v856 = vpack.c.bf16 %v849, %v849
    %857 = vmatpush.bf16.msra.mxu0 %v390
    %858 = vmatpush.bf16.msra.mxu0 %v387
    %859 = vmatpush.bf16.msra.mxu0 %v384
    %860 = vmatpush.bf16.msra.mxu0 %v381
    %861 = vmatpush.bf16.msra.mxu0 %v378
    %862 = vmatpush.bf16.msra.mxu0 %v375
    %863 = vmatpush.bf16.msra.mxu0 %v372
    %864 = vmatpush.bf16.msra.mxu0 %v369
    %865 = vmatmul.bf16.gmra.mxu0 %v856
    %v866 = vpop.f32.mrf.mxu0
    %v867 = vadd.f32 %v283, %v866
    %v868 = vpop.f32.mrf.mxu0
    %869 = vdwg.mxu0
    %870 = vmatpush.bf16.msra.mxu0 %v391
    %871 = vmatpush.bf16.msra.mxu0 %v388
    %872 = vmatpush.bf16.msra.mxu0 %v385
    %873 = vmatpush.bf16.msra.mxu0 %v382
    %874 = vmatpush.bf16.msra.mxu0 %v379
    %875 = vmatpush.bf16.msra.mxu0 %v376
    %876 = vmatpush.bf16.msra.mxu0 %v373
    %877 = vmatpush.bf16.msra.mxu0 %v370
    %878 = vmatmul.bf16.gmra.mxu0 %v856
    %v879 = vpop.f32.mrf.mxu0
    %v880 = vadd.f32 %v284, %v879
    %v881 = vpop.f32.mrf.mxu0
    %882 = vdwg.mxu0
    %883 = vmatpush.bf16.msra.mxu0 %v392
    %884 = vmatpush.bf16.msra.mxu0 %v389
    %885 = vmatpush.bf16.msra.mxu0 %v386
    %886 = vmatpush.bf16.msra.mxu0 %v383
    %887 = vmatpush.bf16.msra.mxu0 %v380
    %888 = vmatpush.bf16.msra.mxu0 %v377
    %889 = vmatpush.bf16.msra.mxu0 %v374
    %890 = vmatpush.bf16.msra.mxu0 %v371
    %891 = vmatmul.bf16.gmra.mxu0 %v856
    %v892 = vpop.f32.mrf.mxu0
    %v893 = vadd.f32 %v285, %v892
    %v894 = vpop.f32.mrf.mxu0
    %895 = vdwg.mxu0
    %v896 = vadd.f32 %v853, %v867
    %v897 = vmul.f32 %v896, 0.5
    %v898 = vtanh.pop %v897
    %v899 = vadd.f32 %v898, 1.0
    %v900 = vmul.f32 %v899, 0.5
    %v901 = vadd.f32 %v854, %v880
    %v902 = vmul.f32 %v901, 0.5
    %v903 = vtanh.pop %v902
    %v904 = vadd.f32 %v903, 1.0
    %v905 = vmul.f32 %v904, 0.5
    %v906 = vadd.f32 %v855, %v467
    %v907 = vmul.f32 %v900, %v893
    %v908 = vadd.f32 %v906, %v907
    %v909 = vtanh.pop %v908
    %v910 = vsub.f32 1.0, %v905
    %v911 = vmul.f32 %v910, %v909
    %v912 = vmul.f32 %v905, %v849
    %v913 = vadd.f32 %v911, %v912
    %s914 = sadd.s32 %s273, 6
    %v915 = vstv %s914
    %vm916 = vcmp.lt.s32.totalorder %v915, %v238
    %v917 = vsel %vm916, 1, 0
    %918 = vset.pattern.permute.xlu0 0
    %919 = vperm.xlu0 %918, %v917
    %v920 = vpop.permute.xlu0 %919
    %vm921 = vcmp.eq.s32.totalorder %v920, 1
    %v922 = vsel %vm921, %v913, %v849
    %s923 = smul.u32 7, 3
    %s924 = smul.addr %s923, 8
    %s925 = scalar_lea.vmem [#allocation2], %s924
    %v926 = vld [vmem:[%s925] sm:$0xff]
    %v927 = vld [vmem:[%s925 + $0x8] sm:$0xff]
    %v928 = vld [vmem:[%s925 + $0x10] sm:$0xff]
    %v929 = vpack.c.bf16 %v922, %v922
    %930 = vmatpush.bf16.msra.mxu0 %v390
    %931 = vmatpush.bf16.msra.mxu0 %v387
    %932 = vmatpush.bf16.msra.mxu0 %v384
    %933 = vmatpush.bf16.msra.mxu0 %v381
    %934 = vmatpush.bf16.msra.mxu0 %v378
    %935 = vmatpush.bf16.msra.mxu0 %v375
    %936 = vmatpush.bf16.msra.mxu0 %v372
    %937 = vmatpush.bf16.msra.mxu0 %v369
    %938 = vmatmul.bf16.gmra.mxu0 %v929
    %v939 = vpop.f32.mrf.mxu0
    %v940 = vadd.f32 %v283, %v939
    %v941 = vpop.f32.mrf.mxu0
    %942 = vdwg.mxu0
    %943 = vmatpush.bf16.msra.mxu0 %v391
    %944 = vmatpush.bf16.msra.mxu0 %v388
    %945 = vmatpush.bf16.msra.mxu0 %v385
    %946 = vmatpush.bf16.msra.mxu0 %v382
    %947 = vmatpush.bf16.msra.mxu0 %v379
    %948 = vmatpush.bf16.msra.mxu0 %v376
    %949 = vmatpush.bf16.msra.mxu0 %v373
    %950 = vmatpush.bf16.msra.mxu0 %v370
    %951 = vmatmul.bf16.gmra.mxu0 %v929
    %v952 = vpop.f32.mrf.mxu0
    %v953 = vadd.f32 %v284, %v952
    %v954 = vpop.f32.mrf.mxu0
    %955 = vdwg.mxu0
    %956 = vmatpush.bf16.msra.mxu0 %v392
    %957 = vmatpush.bf16.msra.mxu0 %v389
    %958 = vmatpush.bf16.msra.mxu0 %v386
    %959 = vmatpush.bf16.msra.mxu0 %v383
    %960 = vmatpush.bf16.msra.mxu0 %v380
    %961 = vmatpush.bf16.msra.mxu0 %v377
    %962 = vmatpush.bf16.msra.mxu0 %v374
    %963 = vmatpush.bf16.msra.mxu0 %v371
    %964 = vmatmul.bf16.gmra.mxu0 %v929
    %v965 = vpop.f32.mrf.mxu0
    %v966 = vadd.f32 %v285, %v965
    %v967 = vpop.f32.mrf.mxu0
    %968 = vdwg.mxu0
    %v969 = vadd.f32 %v926, %v940
    %v970 = vmul.f32 %v969, 0.5
    %v971 = vtanh.pop %v970
    %v972 = vadd.f32 %v971, 1.0
    %v973 = vmul.f32 %v972, 0.5
    %v974 = vadd.f32 %v927, %v953
    %v975 = vmul.f32 %v974, 0.5
    %v976 = vtanh.pop %v975
    %v977 = vadd.f32 %v976, 1.0
    %v978 = vmul.f32 %v977, 0.5
    %v979 = vadd.f32 %v928, %v467
    %v980 = vmul.f32 %v973, %v966
    %v981 = vadd.f32 %v979, %v980
    %v982 = vtanh.pop %v981
    %v983 = vsub.f32 1.0, %v978
    %v984 = vmul.f32 %v983, %v982
    %v985 = vmul.f32 %v978, %v922
    %v986 = vadd.f32 %v984, %v985
    %s987 = sadd.s32 %s273, 7
    %v988 = vstv %s987
    %vm989 = vcmp.lt.s32.totalorder %v988, %v238
    %v990 = vsel %vm989, 1, 0
    %991 = vset.pattern.permute.xlu0 0
    %992 = vperm.xlu0 %991, %v990
    %v993 = vpop.permute.xlu0 %992
    %vm994 = vcmp.eq.s32.totalorder %v993, 1
    %v995 = vsel %vm994, %v986, %v922
    %996 = vst [vmem:[#allocation3] sm:$0xff] %v995
    // Predicated region
    $region34: #{tpu_custom_call.1} parent=1 // pred_check
      %p997 = pneg %p41
    $region35: #{tpu_custom_call.1} parent=1 // pred_check_branch
      %999 = sbr.rel (%p997) target = $region37
    $region36: #{tpu_custom_call.1} parent=1 // pred_region
      %1000 = vst [vmem:[#allocation7] sm:$0xff] %v995
    $region37: #{tpu_custom_call.1} parent=1 // pred_fallthru
      _
    // Predicated region
    $region38: #{tpu_custom_call.1} parent=1 // pred_check
      _
    $region39: #{tpu_custom_call.1} parent=1 // pred_check_branch
      %1002 = sbr.rel (0) target = $region41
    $region40: #{tpu_custom_call.1} parent=1 // pred_region
      %1004 = vsyncadd [#allocation6], 0
      %s1006 = sshll.u32 [#allocation7], 4
      %s1007 = int_to_ptr.vmem [resolvable:$true] %s1006
      %s1008 = sshll.u32 %s6, 4
      %s1009 = int_to_ptr.hbm [resolvable:$true] %s1008
      %1011 = dma.vmem_to_hbm [thread:$0]  %s1007, 128, %s1009, [#allocation6]
    $region41: #{tpu_custom_call.1} parent=1 // pred_fallthru
      _
    // Predicated region
    $region42: #{tpu_custom_call.1} parent=1 // pred_check
      _
    $region43: #{tpu_custom_call.1} parent=1 // pred_check_branch
      %1013 = sbr.rel (0) target = $region45
    $region44: #{tpu_custom_call.1} parent=1 // pred_region
      %1015 = dma.done [#allocation6], 128
    $region45: #{tpu_custom_call.1} parent=1 // pred_fallthru
      _
    %1016 = vsyncpa [#allocation5], 1
    %1017 = vsyncpa [#allocation6], 1

</llo_original>
